<compile_context>
chip_gen: v5e
topology: v5e:2x2
jax: 0.10.0
libtpu: 0.0.40
codegen_flags: <defaults>
</compile_context>

<pallas_src>
import functools

import jax
import jax.numpy as jnp
import numpy as np
from jax import lax
from jax.experimental import pallas as pl
from jax.experimental.pallas import tpu as pltpu


def _round_up(x, m):
    return (x + m - 1) // m * m


def _resident_spec(shape, index_map):
    """BlockSpec for a constant-index (resident) operand.

    The index_map returns the same block every grid step, so double-buffering would
    allocate the full weight twice for zero prefetch benefit -> single-buffer it.
    """
    try:
        return pl.BlockSpec(shape, index_map, pipeline_mode=pl.Buffered(1))
    except (TypeError, AttributeError):   # older jax without pipeline_mode support
        return pl.BlockSpec(shape, index_map)


def _vmem_limit_bytes(tt, bp, e, hp):
    """Scoped-VMEM request sized from the actual block footprint (+50% margin)."""
    b_embs = 2 * (tt * bp * e * 2)                 # bf16 embedding block, double-buffered
    b_wi = e * 3 * hp * 2                          # bf16 W_i, single-buffered
    b_wh = hp * 3 * hp * 2                         # bf16 W_h, single-buffered
    b_bias = 8 * 3 * hp * 4 + 8 * hp * 4           # sublane-padded f32 bias blocks
    b_out = 2 * (bp * hp * 4)                      # f32 output block
    b_scr = bp * hp * 4 + tt * bp * 3 * hp * 4     # h scratch + per-block input gates
    need = b_embs + b_wi + b_wh + b_bias + b_out + b_scr
    return int(min(max(int(need * 1.5) + (2 << 20), 16 << 20), 64 << 20))


# ---------------------------------------------------------------------------
# Fused kernel: per grid step = TT timesteps
#   prologue: input gates for the block via one (TT*Bp, E) x (E, 3Hp) MXU matmul
#   body:     unrolled GRU recurrence, hidden state carried in f32 VMEM scratch
# ---------------------------------------------------------------------------
def _gru_fused_kernel(x_ref, wi_ref, bi_ref, wh_ref, bhn_ref, h_out_ref,
                      h_scratch, gi_scratch, *, seq_len, tt, hp, mask_tail):
    blk = pl.program_id(0)

    @pl.when(blk == 0)
    def _():
        h_scratch[...] = jnp.zeros_like(h_scratch)

    bp = h_scratch.shape[0]

    # --- input projection for this time block (bf16 MXU, f32 accumulation) ---
    gi_scratch[...] = (
        jnp.dot(x_ref[...], wi_ref[...], preferred_element_type=jnp.float32)
        + bi_ref[...]
    )

    wh = wh_ref[...]                                   # (Hp, 3Hp) bf16, resident
    bhn = jnp.broadcast_to(bhn_ref[...], (bp, hp))     # hoisted out of the loop
    h0 = h_scratch[...]                                # (Bp, Hp) f32
    t0 = blk * tt

    def step(i, h):
        row = pl.multiple_of(i * bp, 8)
        gi = gi_scratch[pl.ds(row, bp), :]             # (Bp, 3Hp) f32 precomputed gates
        gh = jnp.dot(h.astype(jnp.bfloat16), wh,
                     preferred_element_type=jnp.float32)   # (Bp, 3Hp) f32
        r = jax.nn.sigmoid(gi[:, :hp] + gh[:, :hp])
        z = jax.nn.sigmoid(gi[:, hp:2 * hp] + gh[:, hp:2 * hp])
        n = jnp.tanh(gi[:, 2 * hp:] + r * (gh[:, 2 * hp:] + bhn))
        h_new = (1.0 - z) * n + z * h
        if mask_tail:  # static: only emitted when T was padded to a TT multiple
            h_new = jnp.where(t0 + i < seq_len, h_new, h)
        return h_new

    h_last = lax.fori_loop(0, tt, step, h0, unroll=True)
    h_scratch[...] = h_last

    @pl.when(blk == pl.num_programs(0) - 1)
    def _():
        h_out_ref[...] = h_last.astype(h_out_ref.dtype)


def _gru_last_hidden(embs_2d, wi, bi, wh, bhn, *, seq_len, tt, hp, bp):
    """embs_2d: (T_pad*Bp, E) bf16; returns last hidden state (Bp, Hp) f32."""
    e = embs_2d.shape[1]
    t_pad = embs_2d.shape[0] // bp
    n_blocks = t_pad // tt
    kernel = functools.partial(
        _gru_fused_kernel, seq_len=seq_len, tt=tt, hp=hp,
        mask_tail=(t_pad != seq_len))

    return pl.pallas_call(
        kernel,
        out_shape=jax.ShapeDtypeStruct((bp, hp), jnp.float32),
        grid_spec=pltpu.PrefetchScalarGridSpec(
            num_scalar_prefetch=0,
            grid=(n_blocks,),
            in_specs=[
                pl.BlockSpec((tt * bp, e), lambda b: (b, 0)),    # streamed embeddings (bf16)
                _resident_spec((e, 3 * hp), lambda b: (0, 0)),   # W_i fused (bf16)
                _resident_spec((1, 3 * hp), lambda b: (0, 0)),   # fused input bias (f32)
                _resident_spec((hp, 3 * hp), lambda b: (0, 0)),  # W_h fused (bf16)
                _resident_spec((1, hp), lambda b: (0, 0)),       # b_hn (f32)
            ],
            out_specs=pl.BlockSpec((bp, hp), lambda b: (0, 0)),
            scratch_shapes=[
                pltpu.VMEM((bp, hp), jnp.float32),               # carried hidden state
                pltpu.VMEM((tt * bp, 3 * hp), jnp.float32),      # per-block input gates
            ],
        ),
        compiler_params=pltpu.CompilerParams(
            dimension_semantics=("arbitrary",),   # recurrence: sequential in time
            vmem_limit_bytes=_vmem_limit_bytes(tt, bp, e, hp),
        ),
    )(embs_2d, wi, bi, wh, bhn)


# ---------------------------------------------------------------------------
# Full RNNEncoder.forward
# ---------------------------------------------------------------------------
@jax.jit
def rnn_encoder_forward(sentence, emb_table, w_ih, w_hh, b_ih, b_hh):
    """sentence: (B, T) int32; returns last hidden state (B, H)."""
    B, T = sentence.shape
    E = emb_table.shape[1]
    H = w_hh.shape[1]
    Hp = _round_up(H, 128)        # lane-dense hidden dim
    Bp = _round_up(B, 8)          # full f32 sublanes

    # Time-block / unroll size: cap lower for large Hp to limit live vregs; prefer a
    # TT that divides T so the tail mask disappears from the unrolled inner loop.
    tt_cap = 32 if Hp <= 256 else 16
    TT = min(T, tt_cap)
    for cand in range(TT, max(TT // 2, 1) - 1, -1):
        if T % cand == 0:
            TT = cand
            break
    T_pad = _round_up(T, TT)

    # --- embedding lookup, gathered time-major in bf16 (Dropword(p=0.0) -> identity) ---
    embs_tbe = jnp.take(emb_table.astype(jnp.bfloat16), sentence.T, axis=0)  # (T, B, E)
    embs_tbe = jnp.pad(embs_tbe, ((0, T_pad - T), (0, Bp - B), (0, 0)))      # (T_pad, Bp, E)
    embs_2d = embs_tbe.reshape(T_pad * Bp, E)

    # --- fuse + pad GRU parameters (PyTorch layout: w_* is (3H, *), gate order r,z,n) ---
    def pad_cols(a):      # (..., H) -> (..., Hp)
        return jnp.pad(a, [(0, 0)] * (a.ndim - 1) + [(0, Hp - H)])

    wir, wiz, win = (w_ih[g * H:(g + 1) * H].T for g in range(3))     # (E, H) each
    whr, whz, whn = (w_hh[g * H:(g + 1) * H].T for g in range(3))     # (H, H) each
    bir, biz, bin_ = (b_ih[g * H:(g + 1) * H] for g in range(3))
    bhr, bhz, bhn = (b_hh[g * H:(g + 1) * H] for g in range(3))

    # bf16 MXU operands; zero-padded rows/cols keep padded hidden lanes exactly zero.
    wi_fused = jnp.concatenate(
        [pad_cols(wir), pad_cols(wiz), pad_cols(win)], axis=1).astype(jnp.bfloat16)    # (E, 3Hp)
    wh_fused = jnp.concatenate(
        [jnp.pad(pad_cols(w), ((0, Hp - H), (0, 0))) for w in (whr, whz, whn)],
        axis=1).astype(jnp.bfloat16)                                                    # (Hp, 3Hp)
    # b_ir+b_hr and b_iz+b_hz folded into the input gates; b_hn stays inside r*( . ).
    bi_fused = jnp.concatenate(
        [pad_cols(bir + bhr), pad_cols(biz + bhz), pad_cols(bin_)]
    ).reshape(1, 3 * Hp).astype(jnp.float32)
    bhn_pad = pad_cols(bhn).reshape(1, Hp).astype(jnp.float32)

    # --- fused projection + sequential GRU recurrence (time-blocked) ---
    h_last = _gru_last_hidden(embs_2d, wi_fused, bi_fused, wh_fused, bhn_pad,
                              seq_len=T, tt=TT, hp=Hp, bp=Bp)          # (Bp, Hp)

    # NoiseLayer(noise=0.0) -> identity.
    return h_last[:B, :H]


# ---------------------------------------------------------------------------
# Parameter init (mirrors nn.Embedding / nn.GRU shapes) + pure-JAX reference
# ---------------------------------------------------------------------------
def _init_params(key, vocab_size, emb_size, hid_size, pad_idx=0):
    ks = jax.random.split(key, 5)
    emb = jax.random.normal(ks[0], (vocab_size, emb_size), jnp.float32)
    emb = emb.at[pad_idx].set(0.0)                      # padding_idx row is zero

    bound = 1.0 / np.sqrt(hid_size)
    u = lambda k, shape: jax.random.uniform(k, shape, jnp.float32, -bound, bound)
    w_ih = u(ks[1], (3 * hid_size, emb_size))           # gate order [r, z, n]
    w_hh = u(ks[2], (3 * hid_size, hid_size))
    b_ih = u(ks[3], (3 * hid_size,))
    b_hh = u(ks[4], (3 * hid_size,))
    return emb, w_ih, w_hh, b_ih, b_hh


def _gru_reference(embs_bte, w_ih, w_hh, b_ih, b_hh):
    """Pure-JAX lax.scan reference with PyTorch GRU semantics (f32 everywhere)."""
    B = embs_bte.shape[0]
    H = w_hh.shape[1]
    h0 = jnp.zeros((B, H), jnp.float32)

    def step(h, x):
        gi = x @ w_ih.T + b_ih
        gh = h @ w_hh.T + b_hh
        i_r, i_z, i_n = jnp.split(gi, 3, axis=-1)
        h_r, h_z, h_n = jnp.split(gh, 3, axis=-1)
        r = jax.nn.sigmoid(i_r + h_r)
        z = jax.nn.sigmoid(i_z + h_z)
        n = jnp.tanh(i_n + r * h_n)
        return (1.0 - z) * n + z * h, None

    h_last, _ = lax.scan(step, h0, jnp.transpose(embs_bte, (1, 0, 2)))
    return h_last


if __name__ == "__main__":
    # Small shapes: vocab=20, emb=32, hidden=32, batch=2, seq=8, pad idx 0.
    VOCAB, EMB, HID, B, T = 20, 32, 32, 2, 8

    key = jax.random.PRNGKey(0)
    k_tok, k_par = jax.random.split(key)
    sentence = jax.random.randint(k_tok, (B, T), 0, VOCAB, dtype=jnp.int32)

    emb_table, w_ih, w_hh, b_ih, b_hh = _init_params(k_par, VOCAB, EMB, HID, pad_idx=0)

    out = rnn_encoder_forward(sentence, emb_table, w_ih, w_hh, b_ih, b_hh)
    out = jax.block_until_ready(out)

    # Sanity check against an f32 pure-JAX reference (tolerance accounts for bf16 MXU
    # operands / bf16 embedding stream with f32 accumulation).
    embs = jnp.take(emb_table, sentence, axis=0)
    ref = _gru_reference(embs, w_ih, w_hh, b_ih, b_hh)
    np.testing.assert_allclose(np.asarray(out), np.asarray(ref), atol=3e-2, rtol=3e-2)

    assert out.shape == (B, HID)
    print("KERNEL_OK")
</pallas_src>

<mosaic_0001>
module attributes {stable_mosaic.version = 11 : i64} {
  func.func @_gru_fused_kernel(%arg0: i32, %arg1: memref<64x32xbf16, #tpu.memory_space<vmem>>, %arg2: memref<32x384xbf16, #tpu.memory_space<vmem>>, %arg3: memref<1x384xf32, #tpu.memory_space<vmem>>, %arg4: memref<128x384xbf16, #tpu.memory_space<vmem>>, %arg5: memref<1x128xf32, #tpu.memory_space<vmem>>, %arg6: memref<8x128xf32, #tpu.memory_space<vmem>>, %arg7: memref<8x128xf32, #tpu.memory_space<vmem>>, %arg8: memref<64x384xf32, #tpu.memory_space<vmem>>) attributes {dimension_semantics = [#tpu.dimension_semantics<arbitrary>], iteration_bounds = array<i64: 1>, scalar_prefetch = 0 : i64, scratch_operands = 2 : i64, tpu.core_type = #tpu.core_type<tc>, window_params = [{transform_indices = @transform_0, window_bounds = array<i64: 64, 32>}, {pipeline_mode = #tpu.pipeline_mode<synchronous>, transform_indices = @transform_1, window_bounds = array<i64: 32, 384>}, {pipeline_mode = #tpu.pipeline_mode<synchronous>, transform_indices = @transform_2, window_bounds = array<i64: 1, 384>}, {pipeline_mode = #tpu.pipeline_mode<synchronous>, transform_indices = @transform_3, window_bounds = array<i64: 128, 384>}, {pipeline_mode = #tpu.pipeline_mode<synchronous>, transform_indices = @transform_4, window_bounds = array<i64: 1, 128>}, {pipeline_mode = #tpu.pipeline_mode<synchronous>, transform_indices = @transform_5, window_bounds = array<i64: 8, 128>}]} {
    %c0_i32 = arith.constant 0 : i32
    %0 = arith.cmpi eq, %arg0, %c0_i32 : i32
    %1 = arith.extui %0 : i1 to i32
    %c0_i32_0 = arith.constant 0 : i32
    %2 = arith.cmpi ne, %1, %c0_i32_0 : i32
    scf.if %2 {
      %cst_67 = arith.constant 0.000000e+00 : f32
      %283 = vector.broadcast %cst_67 : f32 to vector<8x128xf32>
      %c0_68 = arith.constant 0 : index
      %c0_69 = arith.constant 0 : index
      %284 = vector.load %arg7[%c0_68, %c0_69] : memref<8x128xf32, #tpu.memory_space<vmem>>, vector<8x128xf32>
      tpu.vector_store %arg7[%c0_68, %c0_69], %283 {strides = array<i32>} : memref<8x128xf32, #tpu.memory_space<vmem>>, vector<8x128xf32>,
    } else {
    }
    %c0 = arith.constant 0 : index
    %c0_1 = arith.constant 0 : index
    %3 = vector.load %arg1[%c0, %c0_1] : memref<64x32xbf16, #tpu.memory_space<vmem>>, vector<64x32xbf16>
    %c0_2 = arith.constant 0 : index
    %c0_3 = arith.constant 0 : index
    %4 = vector.load %arg2[%c0_2, %c0_3] : memref<32x384xbf16, #tpu.memory_space<vmem>>, vector<32x384xbf16>
    %cst = arith.constant dense<0.000000e+00> : vector<64x384xf32>
    %5 = tpu.matmul %3, %4, %cst {dimension_numbers = #tpu.dot_dimension_numbers<[1], [0], [0], [1], [0, 0, 1, 1], [], []>} : vector<64x32xbf16>, vector<32x384xbf16>, vector<64x384xf32> -> vector<64x384xf32>
    %c0_4 = arith.constant 0 : index
    %c0_5 = arith.constant 0 : index
    %6 = vector.load %arg3[%c0_4, %c0_5] : memref<1x384xf32, #tpu.memory_space<vmem>>, vector<1x384xf32>
    %7 = vector.broadcast %6 : vector<1x384xf32> to vector<64x384xf32>
    %8 = arith.addf %5, %7 : vector<64x384xf32>
    %c0_6 = arith.constant 0 : index
    %c0_7 = arith.constant 0 : index
    %9 = vector.load %arg8[%c0_6, %c0_7] : memref<64x384xf32, #tpu.memory_space<vmem>>, vector<64x384xf32>
    tpu.vector_store %arg8[%c0_6, %c0_7], %8 {strides = array<i32>} : memref<64x384xf32, #tpu.memory_space<vmem>>, vector<64x384xf32>,
    %c0_8 = arith.constant 0 : index
    %c0_9 = arith.constant 0 : index
    %10 = vector.load %arg4[%c0_8, %c0_9] : memref<128x384xbf16, #tpu.memory_space<vmem>>, vector<128x384xbf16>
    %c0_10 = arith.constant 0 : index
    %c0_11 = arith.constant 0 : index
    %11 = vector.load %arg5[%c0_10, %c0_11] : memref<1x128xf32, #tpu.memory_space<vmem>>, vector<1x128xf32>
    %12 = vector.shape_cast %11 : vector<1x128xf32> to vector<1x128xf32>
    %13 = vector.broadcast %12 : vector<1x128xf32> to vector<8x128xf32>
    %c0_12 = arith.constant 0 : index
    %c0_13 = arith.constant 0 : index
    %14 = vector.load %arg7[%c0_12, %c0_13] : memref<8x128xf32, #tpu.memory_space<vmem>>, vector<8x128xf32>
    %c0_i32_14 = arith.constant 0 : i32
    %c8_i32 = arith.constant 8 : i32
    %15 = arith.muli %c0_i32_14, %c8_i32 : i32
    %16 = tpu.assume_multiple %15, 8 : i32
    %17 = arith.index_cast %16 : i32 to index
    %c0_15 = arith.constant 0 : index
    %18 = vector.load %arg8[%17, %c0_15] : memref<64x384xf32, #tpu.memory_space<vmem>>, vector<8x384xf32>
    %19 = arith.truncf %14 : vector<8x128xf32> to vector<8x128xbf16>
    %cst_16 = arith.constant dense<0.000000e+00> : vector<8x384xf32>
    %20 = tpu.matmul %19, %10, %cst_16 {dimension_numbers = #tpu.dot_dimension_numbers<[1], [0], [0], [1], [0, 0, 1, 1], [], []>} : vector<8x128xbf16>, vector<128x384xbf16>, vector<8x384xf32> -> vector<8x384xf32>
    %21 = vector.extract_strided_slice %18 {offsets = [0, 0], sizes = [8, 128], strides = [1, 1]} : vector<8x384xf32> to vector<8x128xf32>
    %22 = vector.extract_strided_slice %20 {offsets = [0, 0], sizes = [8, 128], strides = [1, 1]} : vector<8x384xf32> to vector<8x128xf32>
    %23 = arith.addf %21, %22 : vector<8x128xf32>
    %24 = arith.negf %23 : vector<8x128xf32>
    %25 = math.exp %24 : vector<8x128xf32>
    %cst_17 = arith.constant 1.000000e+00 : f32
    %26 = vector.broadcast %cst_17 : f32 to vector<8x128xf32>
    %27 = arith.addf %26, %25 : vector<8x128xf32>
    %28 = arith.divf %26, %27 : vector<8x128xf32>
    %29 = vector.extract_strided_slice %18 {offsets = [0, 128], sizes = [8, 128], strides = [1, 1]} : vector<8x384xf32> to vector<8x128xf32>
    %30 = vector.extract_strided_slice %20 {offsets = [0, 128], sizes = [8, 128], strides = [1, 1]} : vector<8x384xf32> to vector<8x128xf32>
    %31 = arith.addf %29, %30 : vector<8x128xf32>
    %32 = arith.negf %31 : vector<8x128xf32>
    %33 = math.exp %32 : vector<8x128xf32>
    %cst_18 = arith.constant 1.000000e+00 : f32
    %34 = vector.broadcast %cst_18 : f32 to vector<8x128xf32>
    %35 = arith.addf %34, %33 : vector<8x128xf32>
    %36 = arith.divf %34, %35 : vector<8x128xf32>
    %37 = vector.extract_strided_slice %18 {offsets = [0, 256], sizes = [8, 128], strides = [1, 1]} : vector<8x384xf32> to vector<8x128xf32>
    %38 = vector.extract_strided_slice %20 {offsets = [0, 256], sizes = [8, 128], strides = [1, 1]} : vector<8x384xf32> to vector<8x128xf32>
    %39 = arith.addf %38, %13 : vector<8x128xf32>
    %40 = arith.mulf %28, %39 : vector<8x128xf32>
    %41 = arith.addf %37, %40 : vector<8x128xf32>
    %42 = math.tanh %41 : vector<8x128xf32>
    %cst_19 = arith.constant 1.000000e+00 : f32
    %43 = vector.broadcast %cst_19 : f32 to vector<8x128xf32>
    %44 = arith.subf %43, %36 : vector<8x128xf32>
    %45 = arith.mulf %44, %42 : vector<8x128xf32>
    %46 = arith.mulf %36, %14 : vector<8x128xf32>
    %47 = arith.addf %45, %46 : vector<8x128xf32>
    %c1_i32 = arith.constant 1 : i32
    %c8_i32_20 = arith.constant 8 : i32
    %48 = arith.muli %c1_i32, %c8_i32_20 : i32
    %49 = tpu.assume_multiple %48, 8 : i32
    %50 = arith.index_cast %49 : i32 to index
    %c0_21 = arith.constant 0 : index
    %51 = vector.load %arg8[%50, %c0_21] : memref<64x384xf32, #tpu.memory_space<vmem>>, vector<8x384xf32>
    %52 = arith.truncf %47 : vector<8x128xf32> to vector<8x128xbf16>
    %cst_22 = arith.constant dense<0.000000e+00> : vector<8x384xf32>
    %53 = tpu.matmul %52, %10, %cst_22 {dimension_numbers = #tpu.dot_dimension_numbers<[1], [0], [0], [1], [0, 0, 1, 1], [], []>} : vector<8x128xbf16>, vector<128x384xbf16>, vector<8x384xf32> -> vector<8x384xf32>
    %54 = vector.extract_strided_slice %51 {offsets = [0, 0], sizes = [8, 128], strides = [1, 1]} : vector<8x384xf32> to vector<8x128xf32>
    %55 = vector.extract_strided_slice %53 {offsets = [0, 0], sizes = [8, 128], strides = [1, 1]} : vector<8x384xf32> to vector<8x128xf32>
    %56 = arith.addf %54, %55 : vector<8x128xf32>
    %57 = arith.negf %56 : vector<8x128xf32>
    %58 = math.exp %57 : vector<8x128xf32>
    %cst_23 = arith.constant 1.000000e+00 : f32
    %59 = vector.broadcast %cst_23 : f32 to vector<8x128xf32>
    %60 = arith.addf %59, %58 : vector<8x128xf32>
    %61 = arith.divf %59, %60 : vector<8x128xf32>
    %62 = vector.extract_strided_slice %51 {offsets = [0, 128], sizes = [8, 128], strides = [1, 1]} : vector<8x384xf32> to vector<8x128xf32>
    %63 = vector.extract_strided_slice %53 {offsets = [0, 128], sizes = [8, 128], strides = [1, 1]} : vector<8x384xf32> to vector<8x128xf32>
    %64 = arith.addf %62, %63 : vector<8x128xf32>
    %65 = arith.negf %64 : vector<8x128xf32>
    %66 = math.exp %65 : vector<8x128xf32>
    %cst_24 = arith.constant 1.000000e+00 : f32
    %67 = vector.broadcast %cst_24 : f32 to vector<8x128xf32>
    %68 = arith.addf %67, %66 : vector<8x128xf32>
    %69 = arith.divf %67, %68 : vector<8x128xf32>
    %70 = vector.extract_strided_slice %51 {offsets = [0, 256], sizes = [8, 128], strides = [1, 1]} : vector<8x384xf32> to vector<8x128xf32>
    %71 = vector.extract_strided_slice %53 {offsets = [0, 256], sizes = [8, 128], strides = [1, 1]} : vector<8x384xf32> to vector<8x128xf32>
    %72 = arith.addf %71, %13 : vector<8x128xf32>
    %73 = arith.mulf %61, %72 : vector<8x128xf32>
    %74 = arith.addf %70, %73 : vector<8x128xf32>
    %75 = math.tanh %74 : vector<8x128xf32>
    %cst_25 = arith.constant 1.000000e+00 : f32
    %76 = vector.broadcast %cst_25 : f32 to vector<8x128xf32>
    %77 = arith.subf %76, %69 : vector<8x128xf32>
    %78 = arith.mulf %77, %75 : vector<8x128xf32>
    %79 = arith.mulf %69, %47 : vector<8x128xf32>
    %80 = arith.addf %78, %79 : vector<8x128xf32>
    %c2_i32 = arith.constant 2 : i32
    %c8_i32_26 = arith.constant 8 : i32
    %81 = arith.muli %c2_i32, %c8_i32_26 : i32
    %82 = tpu.assume_multiple %81, 8 : i32
    %83 = arith.index_cast %82 : i32 to index
    %c0_27 = arith.constant 0 : index
    %84 = vector.load %arg8[%83, %c0_27] : memref<64x384xf32, #tpu.memory_space<vmem>>, vector<8x384xf32>
    %85 = arith.truncf %80 : vector<8x128xf32> to vector<8x128xbf16>
    %cst_28 = arith.constant dense<0.000000e+00> : vector<8x384xf32>
    %86 = tpu.matmul %85, %10, %cst_28 {dimension_numbers = #tpu.dot_dimension_numbers<[1], [0], [0], [1], [0, 0, 1, 1], [], []>} : vector<8x128xbf16>, vector<128x384xbf16>, vector<8x384xf32> -> vector<8x384xf32>
    %87 = vector.extract_strided_slice %84 {offsets = [0, 0], sizes = [8, 128], strides = [1, 1]} : vector<8x384xf32> to vector<8x128xf32>
    %88 = vector.extract_strided_slice %86 {offsets = [0, 0], sizes = [8, 128], strides = [1, 1]} : vector<8x384xf32> to vector<8x128xf32>
    %89 = arith.addf %87, %88 : vector<8x128xf32>
    %90 = arith.negf %89 : vector<8x128xf32>
    %91 = math.exp %90 : vector<8x128xf32>
    %cst_29 = arith.constant 1.000000e+00 : f32
    %92 = vector.broadcast %cst_29 : f32 to vector<8x128xf32>
    %93 = arith.addf %92, %91 : vector<8x128xf32>
    %94 = arith.divf %92, %93 : vector<8x128xf32>
    %95 = vector.extract_strided_slice %84 {offsets = [0, 128], sizes = [8, 128], strides = [1, 1]} : vector<8x384xf32> to vector<8x128xf32>
    %96 = vector.extract_strided_slice %86 {offsets = [0, 128], sizes = [8, 128], strides = [1, 1]} : vector<8x384xf32> to vector<8x128xf32>
    %97 = arith.addf %95, %96 : vector<8x128xf32>
    %98 = arith.negf %97 : vector<8x128xf32>
    %99 = math.exp %98 : vector<8x128xf32>
    %cst_30 = arith.constant 1.000000e+00 : f32
    %100 = vector.broadcast %cst_30 : f32 to vector<8x128xf32>
    %101 = arith.addf %100, %99 : vector<8x128xf32>
    %102 = arith.divf %100, %101 : vector<8x128xf32>
    %103 = vector.extract_strided_slice %84 {offsets = [0, 256], sizes = [8, 128], strides = [1, 1]} : vector<8x384xf32> to vector<8x128xf32>
    %104 = vector.extract_strided_slice %86 {offsets = [0, 256], sizes = [8, 128], strides = [1, 1]} : vector<8x384xf32> to vector<8x128xf32>
    %105 = arith.addf %104, %13 : vector<8x128xf32>
    %106 = arith.mulf %94, %105 : vector<8x128xf32>
    %107 = arith.addf %103, %106 : vector<8x128xf32>
    %108 = math.tanh %107 : vector<8x128xf32>
    %cst_31 = arith.constant 1.000000e+00 : f32
    %109 = vector.broadcast %cst_31 : f32 to vector<8x128xf32>
    %110 = arith.subf %109, %102 : vector<8x128xf32>
    %111 = arith.mulf %110, %108 : vector<8x128xf32>
    %112 = arith.mulf %102, %80 : vector<8x128xf32>
    %113 = arith.addf %111, %112 : vector<8x128xf32>
    %c3_i32 = arith.constant 3 : i32
    %c8_i32_32 = arith.constant 8 : i32
    %114 = arith.muli %c3_i32, %c8_i32_32 : i32
    %115 = tpu.assume_multiple %114, 8 : i32
    %116 = arith.index_cast %115 : i32 to index
    %c0_33 = arith.constant 0 : index
    %117 = vector.load %arg8[%116, %c0_33] : memref<64x384xf32, #tpu.memory_space<vmem>>, vector<8x384xf32>
    %118 = arith.truncf %113 : vector<8x128xf32> to vector<8x128xbf16>
    %cst_34 = arith.constant dense<0.000000e+00> : vector<8x384xf32>
    %119 = tpu.matmul %118, %10, %cst_34 {dimension_numbers = #tpu.dot_dimension_numbers<[1], [0], [0], [1], [0, 0, 1, 1], [], []>} : vector<8x128xbf16>, vector<128x384xbf16>, vector<8x384xf32> -> vector<8x384xf32>
    %120 = vector.extract_strided_slice %117 {offsets = [0, 0], sizes = [8, 128], strides = [1, 1]} : vector<8x384xf32> to vector<8x128xf32>
    %121 = vector.extract_strided_slice %119 {offsets = [0, 0], sizes = [8, 128], strides = [1, 1]} : vector<8x384xf32> to vector<8x128xf32>
    %122 = arith.addf %120, %121 : vector<8x128xf32>
    %123 = arith.negf %122 : vector<8x128xf32>
    %124 = math.exp %123 : vector<8x128xf32>
    %cst_35 = arith.constant 1.000000e+00 : f32
    %125 = vector.broadcast %cst_35 : f32 to vector<8x128xf32>
    %126 = arith.addf %125, %124 : vector<8x128xf32>
    %127 = arith.divf %125, %126 : vector<8x128xf32>
    %128 = vector.extract_strided_slice %117 {offsets = [0, 128], sizes = [8, 128], strides = [1, 1]} : vector<8x384xf32> to vector<8x128xf32>
    %129 = vector.extract_strided_slice %119 {offsets = [0, 128], sizes = [8, 128], strides = [1, 1]} : vector<8x384xf32> to vector<8x128xf32>
    %130 = arith.addf %128, %129 : vector<8x128xf32>
    %131 = arith.negf %130 : vector<8x128xf32>
    %132 = math.exp %131 : vector<8x128xf32>
    %cst_36 = arith.constant 1.000000e+00 : f32
    %133 = vector.broadcast %cst_36 : f32 to vector<8x128xf32>
    %134 = arith.addf %133, %132 : vector<8x128xf32>
    %135 = arith.divf %133, %134 : vector<8x128xf32>
    %136 = vector.extract_strided_slice %117 {offsets = [0, 256], sizes = [8, 128], strides = [1, 1]} : vector<8x384xf32> to vector<8x128xf32>
    %137 = vector.extract_strided_slice %119 {offsets = [0, 256], sizes = [8, 128], strides = [1, 1]} : vector<8x384xf32> to vector<8x128xf32>
    %138 = arith.addf %137, %13 : vector<8x128xf32>
    %139 = arith.mulf %127, %138 : vector<8x128xf32>
    %140 = arith.addf %136, %139 : vector<8x128xf32>
    %141 = math.tanh %140 : vector<8x128xf32>
    %cst_37 = arith.constant 1.000000e+00 : f32
    %142 = vector.broadcast %cst_37 : f32 to vector<8x128xf32>
    %143 = arith.subf %142, %135 : vector<8x128xf32>
    %144 = arith.mulf %143, %141 : vector<8x128xf32>
    %145 = arith.mulf %135, %113 : vector<8x128xf32>
    %146 = arith.addf %144, %145 : vector<8x128xf32>
    %c4_i32 = arith.constant 4 : i32
    %c8_i32_38 = arith.constant 8 : i32
    %147 = arith.muli %c4_i32, %c8_i32_38 : i32
    %148 = tpu.assume_multiple %147, 8 : i32
    %149 = arith.index_cast %148 : i32 to index
    %c0_39 = arith.constant 0 : index
    %150 = vector.load %arg8[%149, %c0_39] : memref<64x384xf32, #tpu.memory_space<vmem>>, vector<8x384xf32>
    %151 = arith.truncf %146 : vector<8x128xf32> to vector<8x128xbf16>
    %cst_40 = arith.constant dense<0.000000e+00> : vector<8x384xf32>
    %152 = tpu.matmul %151, %10, %cst_40 {dimension_numbers = #tpu.dot_dimension_numbers<[1], [0], [0], [1], [0, 0, 1, 1], [], []>} : vector<8x128xbf16>, vector<128x384xbf16>, vector<8x384xf32> -> vector<8x384xf32>
    %153 = vector.extract_strided_slice %150 {offsets = [0, 0], sizes = [8, 128], strides = [1, 1]} : vector<8x384xf32> to vector<8x128xf32>
    %154 = vector.extract_strided_slice %152 {offsets = [0, 0], sizes = [8, 128], strides = [1, 1]} : vector<8x384xf32> to vector<8x128xf32>
    %155 = arith.addf %153, %154 : vector<8x128xf32>
    %156 = arith.negf %155 : vector<8x128xf32>
    %157 = math.exp %156 : vector<8x128xf32>
    %cst_41 = arith.constant 1.000000e+00 : f32
    %158 = vector.broadcast %cst_41 : f32 to vector<8x128xf32>
    %159 = arith.addf %158, %157 : vector<8x128xf32>
    %160 = arith.divf %158, %159 : vector<8x128xf32>
    %161 = vector.extract_strided_slice %150 {offsets = [0, 128], sizes = [8, 128], strides = [1, 1]} : vector<8x384xf32> to vector<8x128xf32>
    %162 = vector.extract_strided_slice %152 {offsets = [0, 128], sizes = [8, 128], strides = [1, 1]} : vector<8x384xf32> to vector<8x128xf32>
    %163 = arith.addf %161, %162 : vector<8x128xf32>
    %164 = arith.negf %163 : vector<8x128xf32>
    %165 = math.exp %164 : vector<8x128xf32>
    %cst_42 = arith.constant 1.000000e+00 : f32
    %166 = vector.broadcast %cst_42 : f32 to vector<8x128xf32>
    %167 = arith.addf %166, %165 : vector<8x128xf32>
    %168 = arith.divf %166, %167 : vector<8x128xf32>
    %169 = vector.extract_strided_slice %150 {offsets = [0, 256], sizes = [8, 128], strides = [1, 1]} : vector<8x384xf32> to vector<8x128xf32>
    %170 = vector.extract_strided_slice %152 {offsets = [0, 256], sizes = [8, 128], strides = [1, 1]} : vector<8x384xf32> to vector<8x128xf32>
    %171 = arith.addf %170, %13 : vector<8x128xf32>
    %172 = arith.mulf %160, %171 : vector<8x128xf32>
    %173 = arith.addf %169, %172 : vector<8x128xf32>
    %174 = math.tanh %173 : vector<8x128xf32>
    %cst_43 = arith.constant 1.000000e+00 : f32
    %175 = vector.broadcast %cst_43 : f32 to vector<8x128xf32>
    %176 = arith.subf %175, %168 : vector<8x128xf32>
    %177 = arith.mulf %176, %174 : vector<8x128xf32>
    %178 = arith.mulf %168, %146 : vector<8x128xf32>
    %179 = arith.addf %177, %178 : vector<8x128xf32>
    %c5_i32 = arith.constant 5 : i32
    %c8_i32_44 = arith.constant 8 : i32
    %180 = arith.muli %c5_i32, %c8_i32_44 : i32
    %181 = tpu.assume_multiple %180, 8 : i32
    %182 = arith.index_cast %181 : i32 to index
    %c0_45 = arith.constant 0 : index
    %183 = vector.load %arg8[%182, %c0_45] : memref<64x384xf32, #tpu.memory_space<vmem>>, vector<8x384xf32>
    %184 = arith.truncf %179 : vector<8x128xf32> to vector<8x128xbf16>
    %cst_46 = arith.constant dense<0.000000e+00> : vector<8x384xf32>
    %185 = tpu.matmul %184, %10, %cst_46 {dimension_numbers = #tpu.dot_dimension_numbers<[1], [0], [0], [1], [0, 0, 1, 1], [], []>} : vector<8x128xbf16>, vector<128x384xbf16>, vector<8x384xf32> -> vector<8x384xf32>
    %186 = vector.extract_strided_slice %183 {offsets = [0, 0], sizes = [8, 128], strides = [1, 1]} : vector<8x384xf32> to vector<8x128xf32>
    %187 = vector.extract_strided_slice %185 {offsets = [0, 0], sizes = [8, 128], strides = [1, 1]} : vector<8x384xf32> to vector<8x128xf32>
    %188 = arith.addf %186, %187 : vector<8x128xf32>
    %189 = arith.negf %188 : vector<8x128xf32>
    %190 = math.exp %189 : vector<8x128xf32>
    %cst_47 = arith.constant 1.000000e+00 : f32
    %191 = vector.broadcast %cst_47 : f32 to vector<8x128xf32>
    %192 = arith.addf %191, %190 : vector<8x128xf32>
    %193 = arith.divf %191, %192 : vector<8x128xf32>
    %194 = vector.extract_strided_slice %183 {offsets = [0, 128], sizes = [8, 128], strides = [1, 1]} : vector<8x384xf32> to vector<8x128xf32>
    %195 = vector.extract_strided_slice %185 {offsets = [0, 128], sizes = [8, 128], strides = [1, 1]} : vector<8x384xf32> to vector<8x128xf32>
    %196 = arith.addf %194, %195 : vector<8x128xf32>
    %197 = arith.negf %196 : vector<8x128xf32>
    %198 = math.exp %197 : vector<8x128xf32>
    %cst_48 = arith.constant 1.000000e+00 : f32
    %199 = vector.broadcast %cst_48 : f32 to vector<8x128xf32>
    %200 = arith.addf %199, %198 : vector<8x128xf32>
    %201 = arith.divf %199, %200 : vector<8x128xf32>
    %202 = vector.extract_strided_slice %183 {offsets = [0, 256], sizes = [8, 128], strides = [1, 1]} : vector<8x384xf32> to vector<8x128xf32>
    %203 = vector.extract_strided_slice %185 {offsets = [0, 256], sizes = [8, 128], strides = [1, 1]} : vector<8x384xf32> to vector<8x128xf32>
    %204 = arith.addf %203, %13 : vector<8x128xf32>
    %205 = arith.mulf %193, %204 : vector<8x128xf32>
    %206 = arith.addf %202, %205 : vector<8x128xf32>
    %207 = math.tanh %206 : vector<8x128xf32>
    %cst_49 = arith.constant 1.000000e+00 : f32
    %208 = vector.broadcast %cst_49 : f32 to vector<8x128xf32>
    %209 = arith.subf %208, %201 : vector<8x128xf32>
    %210 = arith.mulf %209, %207 : vector<8x128xf32>
    %211 = arith.mulf %201, %179 : vector<8x128xf32>
    %212 = arith.addf %210, %211 : vector<8x128xf32>
    %c6_i32 = arith.constant 6 : i32
    %c8_i32_50 = arith.constant 8 : i32
    %213 = arith.muli %c6_i32, %c8_i32_50 : i32
    %214 = tpu.assume_multiple %213, 8 : i32
    %215 = arith.index_cast %214 : i32 to index
    %c0_51 = arith.constant 0 : index
    %216 = vector.load %arg8[%215, %c0_51] : memref<64x384xf32, #tpu.memory_space<vmem>>, vector<8x384xf32>
    %217 = arith.truncf %212 : vector<8x128xf32> to vector<8x128xbf16>
    %cst_52 = arith.constant dense<0.000000e+00> : vector<8x384xf32>
    %218 = tpu.matmul %217, %10, %cst_52 {dimension_numbers = #tpu.dot_dimension_numbers<[1], [0], [0], [1], [0, 0, 1, 1], [], []>} : vector<8x128xbf16>, vector<128x384xbf16>, vector<8x384xf32> -> vector<8x384xf32>
    %219 = vector.extract_strided_slice %216 {offsets = [0, 0], sizes = [8, 128], strides = [1, 1]} : vector<8x384xf32> to vector<8x128xf32>
    %220 = vector.extract_strided_slice %218 {offsets = [0, 0], sizes = [8, 128], strides = [1, 1]} : vector<8x384xf32> to vector<8x128xf32>
    %221 = arith.addf %219, %220 : vector<8x128xf32>
    %222 = arith.negf %221 : vector<8x128xf32>
    %223 = math.exp %222 : vector<8x128xf32>
    %cst_53 = arith.constant 1.000000e+00 : f32
    %224 = vector.broadcast %cst_53 : f32 to vector<8x128xf32>
    %225 = arith.addf %224, %223 : vector<8x128xf32>
    %226 = arith.divf %224, %225 : vector<8x128xf32>
    %227 = vector.extract_strided_slice %216 {offsets = [0, 128], sizes = [8, 128], strides = [1, 1]} : vector<8x384xf32> to vector<8x128xf32>
    %228 = vector.extract_strided_slice %218 {offsets = [0, 128], sizes = [8, 128], strides = [1, 1]} : vector<8x384xf32> to vector<8x128xf32>
    %229 = arith.addf %227, %228 : vector<8x128xf32>
    %230 = arith.negf %229 : vector<8x128xf32>
    %231 = math.exp %230 : vector<8x128xf32>
    %cst_54 = arith.constant 1.000000e+00 : f32
    %232 = vector.broadcast %cst_54 : f32 to vector<8x128xf32>
    %233 = arith.addf %232, %231 : vector<8x128xf32>
    %234 = arith.divf %232, %233 : vector<8x128xf32>
    %235 = vector.extract_strided_slice %216 {offsets = [0, 256], sizes = [8, 128], strides = [1, 1]} : vector<8x384xf32> to vector<8x128xf32>
    %236 = vector.extract_strided_slice %218 {offsets = [0, 256], sizes = [8, 128], strides = [1, 1]} : vector<8x384xf32> to vector<8x128xf32>
    %237 = arith.addf %236, %13 : vector<8x128xf32>
    %238 = arith.mulf %226, %237 : vector<8x128xf32>
    %239 = arith.addf %235, %238 : vector<8x128xf32>
    %240 = math.tanh %239 : vector<8x128xf32>
    %cst_55 = arith.constant 1.000000e+00 : f32
    %241 = vector.broadcast %cst_55 : f32 to vector<8x128xf32>
    %242 = arith.subf %241, %234 : vector<8x128xf32>
    %243 = arith.mulf %242, %240 : vector<8x128xf32>
    %244 = arith.mulf %234, %212 : vector<8x128xf32>
    %245 = arith.addf %243, %244 : vector<8x128xf32>
    %c7_i32 = arith.constant 7 : i32
    %c8_i32_56 = arith.constant 8 : i32
    %246 = arith.muli %c7_i32, %c8_i32_56 : i32
    %247 = tpu.assume_multiple %246, 8 : i32
    %248 = arith.index_cast %247 : i32 to index
    %c0_57 = arith.constant 0 : index
    %249 = vector.load %arg8[%248, %c0_57] : memref<64x384xf32, #tpu.memory_space<vmem>>, vector<8x384xf32>
    %250 = arith.truncf %245 : vector<8x128xf32> to vector<8x128xbf16>
    %cst_58 = arith.constant dense<0.000000e+00> : vector<8x384xf32>
    %251 = tpu.matmul %250, %10, %cst_58 {dimension_numbers = #tpu.dot_dimension_numbers<[1], [0], [0], [1], [0, 0, 1, 1], [], []>} : vector<8x128xbf16>, vector<128x384xbf16>, vector<8x384xf32> -> vector<8x384xf32>
    %252 = vector.extract_strided_slice %249 {offsets = [0, 0], sizes = [8, 128], strides = [1, 1]} : vector<8x384xf32> to vector<8x128xf32>
    %253 = vector.extract_strided_slice %251 {offsets = [0, 0], sizes = [8, 128], strides = [1, 1]} : vector<8x384xf32> to vector<8x128xf32>
    %254 = arith.addf %252, %253 : vector<8x128xf32>
    %255 = arith.negf %254 : vector<8x128xf32>
    %256 = math.exp %255 : vector<8x128xf32>
    %cst_59 = arith.constant 1.000000e+00 : f32
    %257 = vector.broadcast %cst_59 : f32 to vector<8x128xf32>
    %258 = arith.addf %257, %256 : vector<8x128xf32>
    %259 = arith.divf %257, %258 : vector<8x128xf32>
    %260 = vector.extract_strided_slice %249 {offsets = [0, 128], sizes = [8, 128], strides = [1, 1]} : vector<8x384xf32> to vector<8x128xf32>
    %261 = vector.extract_strided_slice %251 {offsets = [0, 128], sizes = [8, 128], strides = [1, 1]} : vector<8x384xf32> to vector<8x128xf32>
    %262 = arith.addf %260, %261 : vector<8x128xf32>
    %263 = arith.negf %262 : vector<8x128xf32>
    %264 = math.exp %263 : vector<8x128xf32>
    %cst_60 = arith.constant 1.000000e+00 : f32
    %265 = vector.broadcast %cst_60 : f32 to vector<8x128xf32>
    %266 = arith.addf %265, %264 : vector<8x128xf32>
    %267 = arith.divf %265, %266 : vector<8x128xf32>
    %268 = vector.extract_strided_slice %249 {offsets = [0, 256], sizes = [8, 128], strides = [1, 1]} : vector<8x384xf32> to vector<8x128xf32>
    %269 = vector.extract_strided_slice %251 {offsets = [0, 256], sizes = [8, 128], strides = [1, 1]} : vector<8x384xf32> to vector<8x128xf32>
    %270 = arith.addf %269, %13 : vector<8x128xf32>
    %271 = arith.mulf %259, %270 : vector<8x128xf32>
    %272 = arith.addf %268, %271 : vector<8x128xf32>
    %273 = math.tanh %272 : vector<8x128xf32>
    %cst_61 = arith.constant 1.000000e+00 : f32
    %274 = vector.broadcast %cst_61 : f32 to vector<8x128xf32>
    %275 = arith.subf %274, %267 : vector<8x128xf32>
    %276 = arith.mulf %275, %273 : vector<8x128xf32>
    %277 = arith.mulf %267, %245 : vector<8x128xf32>
    %278 = arith.addf %276, %277 : vector<8x128xf32>
    %c8_i32_62 = arith.constant 8 : i32
    %c0_63 = arith.constant 0 : index
    %c0_64 = arith.constant 0 : index
    %279 = vector.load %arg7[%c0_63, %c0_64] : memref<8x128xf32, #tpu.memory_space<vmem>>, vector<8x128xf32>
    tpu.vector_store %arg7[%c0_63, %c0_64], %278 {strides = array<i32>} : memref<8x128xf32, #tpu.memory_space<vmem>>, vector<8x128xf32>,
    %c0_i32_65 = arith.constant 0 : i32
    %280 = arith.cmpi eq, %arg0, %c0_i32_65 : i32
    %281 = arith.extui %280 : i1 to i32
    %c0_i32_66 = arith.constant 0 : i32
    %282 = arith.cmpi ne, %281, %c0_i32_66 : i32
    scf.if %282 {
      %c0_67 = arith.constant 0 : index
      %c0_68 = arith.constant 0 : index
      %283 = vector.load %arg6[%c0_67, %c0_68] : memref<8x128xf32, #tpu.memory_space<vmem>>, vector<8x128xf32>
      tpu.vector_store %arg6[%c0_67, %c0_68], %278 {strides = array<i32>} : memref<8x128xf32, #tpu.memory_space<vmem>>, vector<8x128xf32>,
    } else {
    }
    return
  }
  func.func @transform_0(%arg0: i32) -> (i32, i32) {
    %c0_i32 = arith.constant 0 : i32
    %c0_i32_0 = arith.constant 0 : i32
    return %arg0, %c0_i32 : i32, i32
  }
  func.func @transform_1(%arg0: i32) -> (i32, i32) {
    %c0_i32 = arith.constant 0 : i32
    %c0_i32_0 = arith.constant 0 : i32
    %c0_i32_1 = arith.constant 0 : i32
    return %c0_i32, %c0_i32_0 : i32, i32
  }
  func.func @transform_2(%arg0: i32) -> (i32, i32) {
    %c0_i32 = arith.constant 0 : i32
    %c0_i32_0 = arith.constant 0 : i32
    %c0_i32_1 = arith.constant 0 : i32
    return %c0_i32, %c0_i32_0 : i32, i32
  }
  func.func @transform_3(%arg0: i32) -> (i32, i32) {
    %c0_i32 = arith.constant 0 : i32
    %c0_i32_0 = arith.constant 0 : i32
    %c0_i32_1 = arith.constant 0 : i32
    return %c0_i32, %c0_i32_0 : i32, i32
  }
  func.func @transform_4(%arg0: i32) -> (i32, i32) {
    %c0_i32 = arith.constant 0 : i32
    %c0_i32_0 = arith.constant 0 : i32
    %c0_i32_1 = arith.constant 0 : i32
    return %c0_i32, %c0_i32_0 : i32, i32
  }
  func.func @transform_5(%arg0: i32) -> (i32, i32) {
    %c0_i32 = arith.constant 0 : i32
    %c0_i32_0 = arith.constant 0 : i32
    %c0_i32_1 = arith.constant 0 : i32
    return %c0_i32, %c0_i32_0 : i32, i32
  }
}

</mosaic_0001>

<llo_original>
// kernel: rnn_encoder_forward.1
$region0: #{rnn_encoder_forward.1}
  #allocation0 [shape = 'u32[]', space=smem, size = 0x4, offset = 0x4, fixed_abs, tag = 'smem constant byte address 0x4 - core index']
  #allocation1 [shape = 'u32[72,128]{1,0:T(1,128)}', space=vmem, size = 0x9000, scoped, tag = 'internal scratch']
  #allocation2 [shape = 'f32[8,128]{1,0:T(8,128)}', space=vmem, size = 0x1000, scoped, tag = 'scratch operand']
  #allocation3 [shape = 'f32[64,384]{1,0:T(8,128)}', space=vmem, size = 0x18000, scoped, tag = 'scratch operand']
  %s0 = inlined_call_operand.vmem [shape: bf16[64,32], index: 0, kind: input, shape index: {}]
  %s1 = inlined_call_operand.vmem [shape: bf16[32,384], index: 1, kind: input, shape index: {}]
  %s2 = inlined_call_operand.vmem [shape: f32[1,384], index: 2, kind: input, shape index: {}]
  %s3 = inlined_call_operand.vmem [shape: bf16[128,384], index: 3, kind: input, shape index: {}]
  %s4 = inlined_call_operand.vmem [shape: f32[1,128], index: 4, kind: input, shape index: {}]
  %s5 = inlined_call_operand.vmem [shape: f32[8,128], index: 5, kind: output, shape index: {}]
  %s6 = sld [smem:[#allocation0]]
  $region38: #{rnn_encoder_forward.1} parent=0
    _
  %s8 = ssub.s32 1, %s6
  %s9 = scalar_select 0, %s8, %s6
  // Predicated region
  $region2: #{rnn_encoder_forward.1} parent=0 // pred_check
    _
  $region3: #{rnn_encoder_forward.1} parent=0 // pred_check_branch
    %11 = sbr.rel (0) target = $region5
  $region4: #{rnn_encoder_forward.1} parent=0 // pred_region
    _
  $region5: #{rnn_encoder_forward.1} parent=0 // pred_fallthru
    _
  // Predicated region
  $region6: #{rnn_encoder_forward.1} parent=0 // pred_check
    _
  $region7: #{rnn_encoder_forward.1} parent=0 // pred_check_branch
    %13 = sbr.rel (0) target = $region9
  $region8: #{rnn_encoder_forward.1} parent=0 // pred_region
    _
  $region9: #{rnn_encoder_forward.1} parent=0 // pred_fallthru
    _
  // Predicated region
  $region10: #{rnn_encoder_forward.1} parent=0 // pred_check
    _
  $region11: #{rnn_encoder_forward.1} parent=0 // pred_check_branch
    %15 = sbr.rel (0) target = $region13
  $region12: #{rnn_encoder_forward.1} parent=0 // pred_region
    _
  $region13: #{rnn_encoder_forward.1} parent=0 // pred_fallthru
    _
  // Predicated region
  $region14: #{rnn_encoder_forward.1} parent=0 // pred_check
    _
  $region15: #{rnn_encoder_forward.1} parent=0 // pred_check_branch
    %17 = sbr.rel (0) target = $region17
  $region16: #{rnn_encoder_forward.1} parent=0 // pred_region
    _
  $region17: #{rnn_encoder_forward.1} parent=0 // pred_fallthru
    _
  // Predicated region
  $region18: #{rnn_encoder_forward.1} parent=0 // pred_check
    _
  $region19: #{rnn_encoder_forward.1} parent=0 // pred_check_branch
    %19 = sbr.rel (0) target = $region21
  $region20: #{rnn_encoder_forward.1} parent=0 // pred_region
    _
  $region21: #{rnn_encoder_forward.1} parent=0 // pred_fallthru
    _
  %p21 = scmp.eq.s32.totalorder 0, 0
  // Predicated region
  $region22: #{rnn_encoder_forward.1} parent=0 // pred_check
    %p22 = pneg %p21
  $region23: #{rnn_encoder_forward.1} parent=0 // pred_check_branch
    %24 = sbr.rel (%p22) target = $region25
  $region24: #{rnn_encoder_forward.1} parent=0 // pred_region
    %25 = vst [vmem:[#allocation2] sm:$0xff] 0.0
  $region25: #{rnn_encoder_forward.1} parent=0 // pred_fallthru
    _
  %v26 = vld [vmem:[%s0] sm:$0xf]
  %v27 = vld [vmem:[%s0 + $0x4] sm:$0xf]
  %v28 = vld [vmem:[%s0 + $0x8] sm:$0xf]
  %v29 = vld [vmem:[%s0 + $0xc] sm:$0xf]
  %v30 = vld [vmem:[%s0 + $0x10] sm:$0xf]
  %v31 = vld [vmem:[%s0 + $0x14] sm:$0xf]
  %v32 = vld [vmem:[%s0 + $0x18] sm:$0xf]
  %v33 = vld [vmem:[%s0 + $0x1c] sm:$0xf]
  %v34 = vld [vmem:[%s1] sm:$0xff]
  %v35 = vld [vmem:[%s1 + $0x8] sm:$0xf]
  %v36 = vld [vmem:[%s1 + $0xc] sm:$0xff]
  %v37 = vld [vmem:[%s1 + $0x14] sm:$0xf]
  %v38 = vld [vmem:[%s1 + $0x18] sm:$0xff]
  %v39 = vld [vmem:[%s1 + $0x20] sm:$0xf]
  %v40 = vld [vmem:[%s1 + $0x24] sm:$0xff]
  %v41 = vld [vmem:[%s1 + $0x2c] sm:$0xf]
  %v42 = vld [vmem:[%s2] sm:$0x7]
  %v44 = vperm.slane %v42, 0
  %v45 = vperm.slane %v42, 1
  %v46 = vperm.slane %v42, 2
  %v58 = vunpack.c.l.b16 %v26
  %v59 = vunpack.c.l.b16 %v27
  %v60 = vunpack.c.l.b16 %v28
  %v61 = vunpack.c.l.b16 %v29
  %v62 = vunpack.c.l.b16 %v30
  %v63 = vunpack.c.l.b16 %v31
  %v64 = vunpack.c.l.b16 %v32
  %v65 = vunpack.c.l.b16 %v33
  %v66 = vpack.c.b16 %v59, %v58
  %v67 = vpack.c.b16 %v61, %v60
  %v68 = vpack.c.b16 %v63, %v62
  %v69 = vpack.c.b16 %v65, %v64
  %v78 = vunpack.c.l.b16 %v34
  %v79 = vunpack.c.h.b16 %v34
  %v80 = vunpack.c.l.b16 %v35
  %v81 = vunpack.c.l.b16 %v36
  %v82 = vunpack.c.h.b16 %v36
  %v83 = vunpack.c.l.b16 %v37
  %v84 = vunpack.c.l.b16 %v38
  %v85 = vunpack.c.h.b16 %v38
  %v86 = vunpack.c.l.b16 %v39
  %v87 = vunpack.c.l.b16 %v40
  %v88 = vunpack.c.h.b16 %v40
  %v89 = vunpack.c.l.b16 %v41
  %v90 = vpack.c.b16 %v81, %v78
  %v91 = vpack.c.b16 %v82, %v79
  %v92 = vpack.c.b16 %v83, %v80
  %v93 = vpack.c.b16 %v87, %v84
  %v94 = vpack.c.b16 %v88, %v85
  %v95 = vpack.c.b16 %v89, %v86
  %vm102 = vcmask 261120
  %v104 = vsel %vm102, %v66, 0
  %v107 = vsel %vm102, %v67, 0
  %v110 = vsel %vm102, %v68, 0
  %v113 = vsel %vm102, %v69, 0
  %115 = vmatpush.bf16.msra.mxu0 0
  %116 = vmatpush.bf16.msra.mxu0 0
  %117 = vmatpush.bf16.msra.mxu0 0
  %118 = vmatpush.bf16.msra.mxu0 0
  %119 = vmatpush.bf16.msra.mxu0 0
  %120 = vmatpush.bf16.msra.mxu0 0
  %121 = vmatpush.bf16.msra.mxu0 %v93
  %122 = vmatpush.bf16.msra.mxu0 %v90
  %123 = vmatmul.bf16.gmra.mxu0 %v104
  %v124 = vpop.f32.mrf.mxu0
  %v125 = vadd.f32 %v44, %v124
  %v126 = vpop.f32.mrf.mxu0
  %v127 = vadd.f32 %v44, %v126
  %128 = vmatmul.bf16.gmra.mxu0 %v107
  %v129 = vpop.f32.mrf.mxu0
  %v130 = vadd.f32 %v44, %v129
  %v131 = vpop.f32.mrf.mxu0
  %v132 = vadd.f32 %v44, %v131
  %133 = vmatmul.bf16.gmra.mxu0 %v110
  %v134 = vpop.f32.mrf.mxu0
  %v135 = vadd.f32 %v44, %v134
  %v136 = vpop.f32.mrf.mxu0
  %v137 = vadd.f32 %v44, %v136
  %138 = vmatmul.bf16.gmra.mxu0 %v113
  %v139 = vpop.f32.mrf.mxu0
  %v140 = vadd.f32 %v44, %v139
  %v141 = vpop.f32.mrf.mxu0
  %v142 = vadd.f32 %v44, %v141
  %143 = vdwg.mxu0
  %144 = vmatpush.bf16.msra.mxu0 0
  %145 = vmatpush.bf16.msra.mxu0 0
  %146 = vmatpush.bf16.msra.mxu0 0
  %147 = vmatpush.bf16.msra.mxu0 0
  %148 = vmatpush.bf16.msra.mxu0 0
  %149 = vmatpush.bf16.msra.mxu0 0
  %150 = vmatpush.bf16.msra.mxu0 %v94
  %151 = vmatpush.bf16.msra.mxu0 %v91
  %152 = vmatmul.bf16.gmra.mxu0 %v104
  %v153 = vpop.f32.mrf.mxu0
  %v154 = vadd.f32 %v45, %v153
  %v155 = vpop.f32.mrf.mxu0
  %v156 = vadd.f32 %v45, %v155
  %157 = vmatmul.bf16.gmra.mxu0 %v107
  %v158 = vpop.f32.mrf.mxu0
  %v159 = vadd.f32 %v45, %v158
  %v160 = vpop.f32.mrf.mxu0
  %v161 = vadd.f32 %v45, %v160
  %162 = vmatmul.bf16.gmra.mxu0 %v110
  %v163 = vpop.f32.mrf.mxu0
  %v164 = vadd.f32 %v45, %v163
  %v165 = vpop.f32.mrf.mxu0
  %v166 = vadd.f32 %v45, %v165
  %167 = vmatmul.bf16.gmra.mxu0 %v113
  %v168 = vpop.f32.mrf.mxu0
  %v169 = vadd.f32 %v45, %v168
  %v170 = vpop.f32.mrf.mxu0
  %v171 = vadd.f32 %v45, %v170
  %172 = vdwg.mxu0
  %173 = vmatpush.bf16.msra.mxu0 0
  %174 = vmatpush.bf16.msra.mxu0 0
  %175 = vmatpush.bf16.msra.mxu0 0
  %176 = vmatpush.bf16.msra.mxu0 0
  %177 = vmatpush.bf16.msra.mxu0 0
  %178 = vmatpush.bf16.msra.mxu0 0
  %179 = vmatpush.bf16.msra.mxu0 %v95
  %180 = vmatpush.bf16.msra.mxu0 %v92
  %181 = vmatmul.bf16.gmra.mxu0 %v104
  %v182 = vpop.f32.mrf.mxu0
  %v183 = vadd.f32 %v46, %v182
  %v184 = vpop.f32.mrf.mxu0
  %v185 = vadd.f32 %v46, %v184
  %186 = vmatmul.bf16.gmra.mxu0 %v107
  %v187 = vpop.f32.mrf.mxu0
  %v188 = vadd.f32 %v46, %v187
  %v189 = vpop.f32.mrf.mxu0
  %v190 = vadd.f32 %v46, %v189
  %191 = vmatmul.bf16.gmra.mxu0 %v110
  %v192 = vpop.f32.mrf.mxu0
  %v193 = vadd.f32 %v46, %v192
  %v194 = vpop.f32.mrf.mxu0
  %v195 = vadd.f32 %v46, %v194
  %196 = vmatmul.bf16.gmra.mxu0 %v113
  %v197 = vpop.f32.mrf.mxu0
  %v198 = vadd.f32 %v46, %v197
  %v199 = vpop.f32.mrf.mxu0
  %v200 = vadd.f32 %v46, %v199
  %201 = vdwg.mxu0
  %202 = vst [vmem:[#allocation3] sm:$0xff] %v125
  %203 = vst [vmem:[#allocation3 + $0x8] sm:$0xff] %v154
  %204 = vst [vmem:[#allocation3 + $0x10] sm:$0xff] %v183
  %205 = vst [vmem:[#allocation3 + $0x18] sm:$0xff] %v127
  %206 = vst [vmem:[#allocation3 + $0x20] sm:$0xff] %v156
  %207 = vst [vmem:[#allocation3 + $0x28] sm:$0xff] %v185
  %208 = vst [vmem:[#allocation3 + $0x30] sm:$0xff] %v130
  %209 = vst [vmem:[#allocation3 + $0x38] sm:$0xff] %v159
  %210 = vst [vmem:[#allocation3 + $0x40] sm:$0xff] %v188
  %211 = vst [vmem:[#allocation3 + $0x48] sm:$0xff] %v132
  %212 = vst [vmem:[#allocation3 + $0x50] sm:$0xff] %v161
  %213 = vst [vmem:[#allocation3 + $0x58] sm:$0xff] %v190
  %214 = vst [vmem:[#allocation3 + $0x60] sm:$0xff] %v135
  %215 = vst [vmem:[#allocation3 + $0x68] sm:$0xff] %v164
  %216 = vst [vmem:[#allocation3 + $0x70] sm:$0xff] %v193
  %217 = vst [vmem:[#allocation3 + $0x78] sm:$0xff] %v137
  %218 = vst [vmem:[#allocation3 + $0x80] sm:$0xff] %v166
  %219 = vst [vmem:[#allocation3 + $0x88] sm:$0xff] %v195
  %220 = vst [vmem:[#allocation3 + $0x90] sm:$0xff] %v140
  %221 = vst [vmem:[#allocation3 + $0x98] sm:$0xff] %v169
  %222 = vst [vmem:[#allocation3 + $0xa0] sm:$0xff] %v198
  %223 = vst [vmem:[#allocation3 + $0xa8] sm:$0xff] %v142
  %224 = vst [vmem:[#allocation3 + $0xb0] sm:$0xff] %v171
  %225 = vst [vmem:[#allocation3 + $0xb8] sm:$0xff] %v200
  %v226 = vld [vmem:[%s3] sm:$0xff]
  %v227 = vld [vmem:[%s3 + $0x8] sm:$0xf]
  %v228 = vld [vmem:[%s3 + $0xc] sm:$0xff]
  %v229 = vld [vmem:[%s3 + $0x14] sm:$0xf]
  %v230 = vld [vmem:[%s3 + $0x18] sm:$0xff]
  %v231 = vld [vmem:[%s3 + $0x20] sm:$0xf]
  %v232 = vld [vmem:[%s3 + $0x24] sm:$0xff]
  %v233 = vld [vmem:[%s3 + $0x2c] sm:$0xf]
  %v234 = vld [vmem:[%s3 + $0x30] sm:$0xff]
  %v235 = vld [vmem:[%s3 + $0x38] sm:$0xf]
  %v236 = vld [vmem:[%s3 + $0x3c] sm:$0xff]
  %v237 = vld [vmem:[%s3 + $0x44] sm:$0xf]
  %v238 = vld [vmem:[%s3 + $0x48] sm:$0xff]
  %v239 = vld [vmem:[%s3 + $0x50] sm:$0xf]
  %v240 = vld [vmem:[%s3 + $0x54] sm:$0xff]
  %v241 = vld [vmem:[%s3 + $0x5c] sm:$0xf]
  %v242 = vld [vmem:[%s3 + $0x60] sm:$0xff]
  %v243 = vld [vmem:[%s3 + $0x68] sm:$0xf]
  %v244 = vld [vmem:[%s3 + $0x6c] sm:$0xff]
  %v245 = vld [vmem:[%s3 + $0x74] sm:$0xf]
  %v246 = vld [vmem:[%s3 + $0x78] sm:$0xff]
  %v247 = vld [vmem:[%s3 + $0x80] sm:$0xf]
  %v248 = vld [vmem:[%s3 + $0x84] sm:$0xff]
  %v249 = vld [vmem:[%s3 + $0x8c] sm:$0xf]
  %v250 = vld [vmem:[%s3 + $0x90] sm:$0xff]
  %v251 = vld [vmem:[%s3 + $0x98] sm:$0xf]
  %v252 = vld [vmem:[%s3 + $0x9c] sm:$0xff]
  %v253 = vld [vmem:[%s3 + $0xa4] sm:$0xf]
  %v254 = vld [vmem:[%s3 + $0xa8] sm:$0xff]
  %v255 = vld [vmem:[%s3 + $0xb0] sm:$0xf]
  %v256 = vld [vmem:[%s3 + $0xb4] sm:$0xff]
  %v257 = vld [vmem:[%s3 + $0xbc] sm:$0xf]
  %v258 = vld [vmem:[%s4] sm:$0x1]
  %v260 = vperm.slane %v258, 0
  %v262 = vld [vmem:[#allocation2] sm:$0xff]
  %s263 = smul.u32 0, 3
  %s264 = smul.addr %s263, 8
  %s265 = scalar_lea.vmem [#allocation3], %s264
  %v266 = vld [vmem:[%s265] sm:$0xff]
  %v267 = vld [vmem:[%s265 + $0x8] sm:$0xff]
  %v268 = vld [vmem:[%s265 + $0x10] sm:$0xff]
  %v269 = vpack.c.bf16 %v262, %v262
  %v302 = vunpack.c.l.b16 %v226
  %v303 = vunpack.c.h.b16 %v226
  %v304 = vunpack.c.l.b16 %v227
  %v305 = vunpack.c.l.b16 %v228
  %v306 = vunpack.c.h.b16 %v228
  %v307 = vunpack.c.l.b16 %v229
  %v308 = vunpack.c.l.b16 %v230
  %v309 = vunpack.c.h.b16 %v230
  %v310 = vunpack.c.l.b16 %v231
  %v311 = vunpack.c.l.b16 %v232
  %v312 = vunpack.c.h.b16 %v232
  %v313 = vunpack.c.l.b16 %v233
  %v314 = vunpack.c.l.b16 %v234
  %v315 = vunpack.c.h.b16 %v234
  %v316 = vunpack.c.l.b16 %v235
  %v317 = vunpack.c.l.b16 %v236
  %v318 = vunpack.c.h.b16 %v236
  %v319 = vunpack.c.l.b16 %v237
  %v320 = vunpack.c.l.b16 %v238
  %v321 = vunpack.c.h.b16 %v238
  %v322 = vunpack.c.l.b16 %v239
  %v323 = vunpack.c.l.b16 %v240
  %v324 = vunpack.c.h.b16 %v240
  %v325 = vunpack.c.l.b16 %v241
  %v326 = vunpack.c.l.b16 %v242
  %v327 = vunpack.c.h.b16 %v242
  %v328 = vunpack.c.l.b16 %v243
  %v329 = vunpack.c.l.b16 %v244
  %v330 = vunpack.c.h.b16 %v244
  %v331 = vunpack.c.l.b16 %v245
  %v332 = vunpack.c.l.b16 %v246
  %v333 = vunpack.c.h.b16 %v246
  %v334 = vunpack.c.l.b16 %v247
  %v335 = vunpack.c.l.b16 %v248
  %v336 = vunpack.c.h.b16 %v248
  %v337 = vunpack.c.l.b16 %v249
  %v338 = vunpack.c.l.b16 %v250
  %v339 = vunpack.c.h.b16 %v250
  %v340 = vunpack.c.l.b16 %v251
  %v341 = vunpack.c.l.b16 %v252
  %v342 = vunpack.c.h.b16 %v252
  %v343 = vunpack.c.l.b16 %v253
  %v344 = vunpack.c.l.b16 %v254
  %v345 = vunpack.c.h.b16 %v254
  %v346 = vunpack.c.l.b16 %v255
  %v347 = vunpack.c.l.b16 %v256
  %v348 = vunpack.c.h.b16 %v256
  %v349 = vunpack.c.l.b16 %v257
  %v350 = vpack.c.b16 %v305, %v302
  %v351 = vpack.c.b16 %v306, %v303
  %v352 = vpack.c.b16 %v307, %v304
  %v353 = vpack.c.b16 %v311, %v308
  %v354 = vpack.c.b16 %v312, %v309
  %v355 = vpack.c.b16 %v313, %v310
  %v356 = vpack.c.b16 %v317, %v314
  %v357 = vpack.c.b16 %v318, %v315
  %v358 = vpack.c.b16 %v319, %v316
  %v359 = vpack.c.b16 %v323, %v320
  %v360 = vpack.c.b16 %v324, %v321
  %v361 = vpack.c.b16 %v325, %v322
  %v362 = vpack.c.b16 %v329, %v326
  %v363 = vpack.c.b16 %v330, %v327
  %v364 = vpack.c.b16 %v331, %v328
  %v365 = vpack.c.b16 %v335, %v332
  %v366 = vpack.c.b16 %v336, %v333
  %v367 = vpack.c.b16 %v337, %v334
  %v368 = vpack.c.b16 %v341, %v338
  %v369 = vpack.c.b16 %v342, %v339
  %v370 = vpack.c.b16 %v343, %v340
  %v371 = vpack.c.b16 %v347, %v344
  %v372 = vpack.c.b16 %v348, %v345
  %v373 = vpack.c.b16 %v349, %v346
  %398 = vmatpush.bf16.msra.mxu0 %v371
  %399 = vmatpush.bf16.msra.mxu0 %v368
  %400 = vmatpush.bf16.msra.mxu0 %v365
  %401 = vmatpush.bf16.msra.mxu0 %v362
  %402 = vmatpush.bf16.msra.mxu0 %v359
  %403 = vmatpush.bf16.msra.mxu0 %v356
  %404 = vmatpush.bf16.msra.mxu0 %v353
  %405 = vmatpush.bf16.msra.mxu0 %v350
  %406 = vmatmul.bf16.gmra.mxu0 %v269
  %v407 = vpop.f32.mrf.mxu0
  %v408 = vadd.f32 0.0, %v407
  %v409 = vpop.f32.mrf.mxu0
  %410 = vdwg.mxu0
  %411 = vmatpush.bf16.msra.mxu0 %v372
  %412 = vmatpush.bf16.msra.mxu0 %v369
  %413 = vmatpush.bf16.msra.mxu0 %v366
  %414 = vmatpush.bf16.msra.mxu0 %v363
  %415 = vmatpush.bf16.msra.mxu0 %v360
  %416 = vmatpush.bf16.msra.mxu0 %v357
  %417 = vmatpush.bf16.msra.mxu0 %v354
  %418 = vmatpush.bf16.msra.mxu0 %v351
  %419 = vmatmul.bf16.gmra.mxu0 %v269
  %v420 = vpop.f32.mrf.mxu0
  %v421 = vadd.f32 0.0, %v420
  %v422 = vpop.f32.mrf.mxu0
  %423 = vdwg.mxu0
  %424 = vmatpush.bf16.msra.mxu0 %v373
  %425 = vmatpush.bf16.msra.mxu0 %v370
  %426 = vmatpush.bf16.msra.mxu0 %v367
  %427 = vmatpush.bf16.msra.mxu0 %v364
  %428 = vmatpush.bf16.msra.mxu0 %v361
  %429 = vmatpush.bf16.msra.mxu0 %v358
  %430 = vmatpush.bf16.msra.mxu0 %v355
  %431 = vmatpush.bf16.msra.mxu0 %v352
  %432 = vmatmul.bf16.gmra.mxu0 %v269
  %v433 = vpop.f32.mrf.mxu0
  %v434 = vadd.f32 0.0, %v433
  %v435 = vpop.f32.mrf.mxu0
  %436 = vdwg.mxu0
  %v437 = vadd.f32 %v266, %v408
  %v438 = vxor.u32 %v437, 2147483648
  %v439 = vmul.f32 %v438, 1.442695
  %v440 = vpow.pop %v439
  %v441 = vadd.f32 %v440, 1.0
  %v442 = vrcp.pop %v441
  %v443 = vmul.f32 %v441, %v442
  %v444 = vsub.f32 1.0, %v443
  %v445 = vmul.f32 %v442, %v444
  %v446 = vadd.f32 %v442, %v445
  %vm447 = vweird.f32 %v441
  %vm448 = vweird.f32 %v442
  %vm449 = vmor %vm447, %vm448
  %v450 = vsel %vm449, %v442, %v446
  %v451 = vand.u32 2147483647, %v441
  %vm452 = vcmp.eq.f32.partialorder %v451, 8.507059e+37
  %v453 = vand.u32 %v441, 2147483648
  %v454 = vor.u32 1.1754944e-38, %v453
  %v455 = vsel %vm452, %v454, %v450
  %v456 = vmul.f32 1.0, %v455
  %v457 = vadd.f32 %v267, %v421
  %v458 = vxor.u32 %v457, 2147483648
  %v459 = vmul.f32 %v458, 1.442695
  %v460 = vpow.pop %v459
  %v461 = vadd.f32 %v460, 1.0
  %v462 = vrcp.pop %v461
  %v463 = vmul.f32 %v461, %v462
  %v464 = vsub.f32 1.0, %v463
  %v465 = vmul.f32 %v462, %v464
  %v466 = vadd.f32 %v462, %v465
  %vm467 = vweird.f32 %v461
  %vm468 = vweird.f32 %v462
  %vm469 = vmor %vm467, %vm468
  %v470 = vsel %vm469, %v462, %v466
  %v471 = vand.u32 2147483647, %v461
  %vm472 = vcmp.eq.f32.partialorder %v471, 8.507059e+37
  %v473 = vand.u32 %v461, 2147483648
  %v474 = vor.u32 1.1754944e-38, %v473
  %v475 = vsel %vm472, %v474, %v470
  %v476 = vmul.f32 1.0, %v475
  %v477 = vadd.f32 %v434, %v260
  %v478 = vmul.f32 %v456, %v477
  %v479 = vadd.f32 %v268, %v478
  %v480 = vtanh.pop %v479
  %v481 = vsub.f32 1.0, %v476
  %v482 = vmul.f32 %v481, %v480
  %v483 = vmul.f32 %v476, %v262
  %v484 = vadd.f32 %v482, %v483
  %s485 = smul.u32 1, 3
  %s486 = smul.addr %s485, 8
  %s487 = scalar_lea.vmem [#allocation3], %s486
  %v488 = vld [vmem:[%s487] sm:$0xff]
  %v489 = vld [vmem:[%s487 + $0x8] sm:$0xff]
  %v490 = vld [vmem:[%s487 + $0x10] sm:$0xff]
  %v491 = vpack.c.bf16 %v484, %v484
  %492 = vmatpush.bf16.msra.mxu0 %v371
  %493 = vmatpush.bf16.msra.mxu0 %v368
  %494 = vmatpush.bf16.msra.mxu0 %v365
  %495 = vmatpush.bf16.msra.mxu0 %v362
  %496 = vmatpush.bf16.msra.mxu0 %v359
  %497 = vmatpush.bf16.msra.mxu0 %v356
  %498 = vmatpush.bf16.msra.mxu0 %v353
  %499 = vmatpush.bf16.msra.mxu0 %v350
  %500 = vmatmul.bf16.gmra.mxu0 %v491
  %v501 = vpop.f32.mrf.mxu0
  %v502 = vadd.f32 0.0, %v501
  %v503 = vpop.f32.mrf.mxu0
  %504 = vdwg.mxu0
  %505 = vmatpush.bf16.msra.mxu0 %v372
  %506 = vmatpush.bf16.msra.mxu0 %v369
  %507 = vmatpush.bf16.msra.mxu0 %v366
  %508 = vmatpush.bf16.msra.mxu0 %v363
  %509 = vmatpush.bf16.msra.mxu0 %v360
  %510 = vmatpush.bf16.msra.mxu0 %v357
  %511 = vmatpush.bf16.msra.mxu0 %v354
  %512 = vmatpush.bf16.msra.mxu0 %v351
  %513 = vmatmul.bf16.gmra.mxu0 %v491
  %v514 = vpop.f32.mrf.mxu0
  %v515 = vadd.f32 0.0, %v514
  %v516 = vpop.f32.mrf.mxu0
  %517 = vdwg.mxu0
  %518 = vmatpush.bf16.msra.mxu0 %v373
  %519 = vmatpush.bf16.msra.mxu0 %v370
  %520 = vmatpush.bf16.msra.mxu0 %v367
  %521 = vmatpush.bf16.msra.mxu0 %v364
  %522 = vmatpush.bf16.msra.mxu0 %v361
  %523 = vmatpush.bf16.msra.mxu0 %v358
  %524 = vmatpush.bf16.msra.mxu0 %v355
  %525 = vmatpush.bf16.msra.mxu0 %v352
  %526 = vmatmul.bf16.gmra.mxu0 %v491
  %v527 = vpop.f32.mrf.mxu0
  %v528 = vadd.f32 0.0, %v527
  %v529 = vpop.f32.mrf.mxu0
  %530 = vdwg.mxu0
  %v531 = vadd.f32 %v488, %v502
  %v532 = vxor.u32 %v531, 2147483648
  %v533 = vmul.f32 %v532, 1.442695
  %v534 = vpow.pop %v533
  %v535 = vadd.f32 %v534, 1.0
  %v536 = vrcp.pop %v535
  %v537 = vmul.f32 %v535, %v536
  %v538 = vsub.f32 1.0, %v537
  %v539 = vmul.f32 %v536, %v538
  %v540 = vadd.f32 %v536, %v539
  %vm541 = vweird.f32 %v535
  %vm542 = vweird.f32 %v536
  %vm543 = vmor %vm541, %vm542
  %v544 = vsel %vm543, %v536, %v540
  %v545 = vand.u32 2147483647, %v535
  %vm546 = vcmp.eq.f32.partialorder %v545, 8.507059e+37
  %v547 = vand.u32 %v535, 2147483648
  %v548 = vor.u32 1.1754944e-38, %v547
  %v549 = vsel %vm546, %v548, %v544
  %v550 = vmul.f32 1.0, %v549
  %v551 = vadd.f32 %v489, %v515
  %v552 = vxor.u32 %v551, 2147483648
  %v553 = vmul.f32 %v552, 1.442695
  %v554 = vpow.pop %v553
  %v555 = vadd.f32 %v554, 1.0
  %v556 = vrcp.pop %v555
  %v557 = vmul.f32 %v555, %v556
  %v558 = vsub.f32 1.0, %v557
  %v559 = vmul.f32 %v556, %v558
  %v560 = vadd.f32 %v556, %v559
  %vm561 = vweird.f32 %v555
  %vm562 = vweird.f32 %v556
  %vm563 = vmor %vm561, %vm562
  %v564 = vsel %vm563, %v556, %v560
  %v565 = vand.u32 2147483647, %v555
  %vm566 = vcmp.eq.f32.partialorder %v565, 8.507059e+37
  %v567 = vand.u32 %v555, 2147483648
  %v568 = vor.u32 1.1754944e-38, %v567
  %v569 = vsel %vm566, %v568, %v564
  %v570 = vmul.f32 1.0, %v569
  %v571 = vadd.f32 %v528, %v260
  %v572 = vmul.f32 %v550, %v571
  %v573 = vadd.f32 %v490, %v572
  %v574 = vtanh.pop %v573
  %v575 = vsub.f32 1.0, %v570
  %v576 = vmul.f32 %v575, %v574
  %v577 = vmul.f32 %v570, %v484
  %v578 = vadd.f32 %v576, %v577
  %s579 = smul.u32 2, 3
  %s580 = smul.addr %s579, 8
  %s581 = scalar_lea.vmem [#allocation3], %s580
  %v582 = vld [vmem:[%s581] sm:$0xff]
  %v583 = vld [vmem:[%s581 + $0x8] sm:$0xff]
  %v584 = vld [vmem:[%s581 + $0x10] sm:$0xff]
  %v585 = vpack.c.bf16 %v578, %v578
  %586 = vmatpush.bf16.msra.mxu0 %v371
  %587 = vmatpush.bf16.msra.mxu0 %v368
  %588 = vmatpush.bf16.msra.mxu0 %v365
  %589 = vmatpush.bf16.msra.mxu0 %v362
  %590 = vmatpush.bf16.msra.mxu0 %v359
  %591 = vmatpush.bf16.msra.mxu0 %v356
  %592 = vmatpush.bf16.msra.mxu0 %v353
  %593 = vmatpush.bf16.msra.mxu0 %v350
  %594 = vmatmul.bf16.gmra.mxu0 %v585
  %v595 = vpop.f32.mrf.mxu0
  %v596 = vadd.f32 0.0, %v595
  %v597 = vpop.f32.mrf.mxu0
  %598 = vdwg.mxu0
  %599 = vmatpush.bf16.msra.mxu0 %v372
  %600 = vmatpush.bf16.msra.mxu0 %v369
  %601 = vmatpush.bf16.msra.mxu0 %v366
  %602 = vmatpush.bf16.msra.mxu0 %v363
  %603 = vmatpush.bf16.msra.mxu0 %v360
  %604 = vmatpush.bf16.msra.mxu0 %v357
  %605 = vmatpush.bf16.msra.mxu0 %v354
  %606 = vmatpush.bf16.msra.mxu0 %v351
  %607 = vmatmul.bf16.gmra.mxu0 %v585
  %v608 = vpop.f32.mrf.mxu0
  %v609 = vadd.f32 0.0, %v608
  %v610 = vpop.f32.mrf.mxu0
  %611 = vdwg.mxu0
  %612 = vmatpush.bf16.msra.mxu0 %v373
  %613 = vmatpush.bf16.msra.mxu0 %v370
  %614 = vmatpush.bf16.msra.mxu0 %v367
  %615 = vmatpush.bf16.msra.mxu0 %v364
  %616 = vmatpush.bf16.msra.mxu0 %v361
  %617 = vmatpush.bf16.msra.mxu0 %v358
  %618 = vmatpush.bf16.msra.mxu0 %v355
  %619 = vmatpush.bf16.msra.mxu0 %v352
  %620 = vmatmul.bf16.gmra.mxu0 %v585
  %v621 = vpop.f32.mrf.mxu0
  %v622 = vadd.f32 0.0, %v621
  %v623 = vpop.f32.mrf.mxu0
  %624 = vdwg.mxu0
  %v625 = vadd.f32 %v582, %v596
  %v626 = vxor.u32 %v625, 2147483648
  %v627 = vmul.f32 %v626, 1.442695
  %v628 = vpow.pop %v627
  %v629 = vadd.f32 %v628, 1.0
  %v630 = vrcp.pop %v629
  %v631 = vmul.f32 %v629, %v630
  %v632 = vsub.f32 1.0, %v631
  %v633 = vmul.f32 %v630, %v632
  %v634 = vadd.f32 %v630, %v633
  %vm635 = vweird.f32 %v629
  %vm636 = vweird.f32 %v630
  %vm637 = vmor %vm635, %vm636
  %v638 = vsel %vm637, %v630, %v634
  %v639 = vand.u32 2147483647, %v629
  %vm640 = vcmp.eq.f32.partialorder %v639, 8.507059e+37
  %v641 = vand.u32 %v629, 2147483648
  %v642 = vor.u32 1.1754944e-38, %v641
  %v643 = vsel %vm640, %v642, %v638
  %v644 = vmul.f32 1.0, %v643
  %v645 = vadd.f32 %v583, %v609
  %v646 = vxor.u32 %v645, 2147483648
  %v647 = vmul.f32 %v646, 1.442695
  %v648 = vpow.pop %v647
  %v649 = vadd.f32 %v648, 1.0
  %v650 = vrcp.pop %v649
  %v651 = vmul.f32 %v649, %v650
  %v652 = vsub.f32 1.0, %v651
  %v653 = vmul.f32 %v650, %v652
  %v654 = vadd.f32 %v650, %v653
  %vm655 = vweird.f32 %v649
  %vm656 = vweird.f32 %v650
  %vm657 = vmor %vm655, %vm656
  %v658 = vsel %vm657, %v650, %v654
  %v659 = vand.u32 2147483647, %v649
  %vm660 = vcmp.eq.f32.partialorder %v659, 8.507059e+37
  %v661 = vand.u32 %v649, 2147483648
  %v662 = vor.u32 1.1754944e-38, %v661
  %v663 = vsel %vm660, %v662, %v658
  %v664 = vmul.f32 1.0, %v663
  %v665 = vadd.f32 %v622, %v260
  %v666 = vmul.f32 %v644, %v665
  %v667 = vadd.f32 %v584, %v666
  %v668 = vtanh.pop %v667
  %v669 = vsub.f32 1.0, %v664
  %v670 = vmul.f32 %v669, %v668
  %v671 = vmul.f32 %v664, %v578
  %v672 = vadd.f32 %v670, %v671
  %s673 = smul.u32 3, 3
  %s674 = smul.addr %s673, 8
  %s675 = scalar_lea.vmem [#allocation3], %s674
  %v676 = vld [vmem:[%s675] sm:$0xff]
  %v677 = vld [vmem:[%s675 + $0x8] sm:$0xff]
  %v678 = vld [vmem:[%s675 + $0x10] sm:$0xff]
  %v679 = vpack.c.bf16 %v672, %v672
  %680 = vmatpush.bf16.msra.mxu0 %v371
  %681 = vmatpush.bf16.msra.mxu0 %v368
  %682 = vmatpush.bf16.msra.mxu0 %v365
  %683 = vmatpush.bf16.msra.mxu0 %v362
  %684 = vmatpush.bf16.msra.mxu0 %v359
  %685 = vmatpush.bf16.msra.mxu0 %v356
  %686 = vmatpush.bf16.msra.mxu0 %v353
  %687 = vmatpush.bf16.msra.mxu0 %v350
  %688 = vmatmul.bf16.gmra.mxu0 %v679
  %v689 = vpop.f32.mrf.mxu0
  %v690 = vadd.f32 0.0, %v689
  %v691 = vpop.f32.mrf.mxu0
  %692 = vdwg.mxu0
  %693 = vmatpush.bf16.msra.mxu0 %v372
  %694 = vmatpush.bf16.msra.mxu0 %v369
  %695 = vmatpush.bf16.msra.mxu0 %v366
  %696 = vmatpush.bf16.msra.mxu0 %v363
  %697 = vmatpush.bf16.msra.mxu0 %v360
  %698 = vmatpush.bf16.msra.mxu0 %v357
  %699 = vmatpush.bf16.msra.mxu0 %v354
  %700 = vmatpush.bf16.msra.mxu0 %v351
  %701 = vmatmul.bf16.gmra.mxu0 %v679
  %v702 = vpop.f32.mrf.mxu0
  %v703 = vadd.f32 0.0, %v702
  %v704 = vpop.f32.mrf.mxu0
  %705 = vdwg.mxu0
  %706 = vmatpush.bf16.msra.mxu0 %v373
  %707 = vmatpush.bf16.msra.mxu0 %v370
  %708 = vmatpush.bf16.msra.mxu0 %v367
  %709 = vmatpush.bf16.msra.mxu0 %v364
  %710 = vmatpush.bf16.msra.mxu0 %v361
  %711 = vmatpush.bf16.msra.mxu0 %v358
  %712 = vmatpush.bf16.msra.mxu0 %v355
  %713 = vmatpush.bf16.msra.mxu0 %v352
  %714 = vmatmul.bf16.gmra.mxu0 %v679
  %v715 = vpop.f32.mrf.mxu0
  %v716 = vadd.f32 0.0, %v715
  %v717 = vpop.f32.mrf.mxu0
  %718 = vdwg.mxu0
  %v719 = vadd.f32 %v676, %v690
  %v720 = vxor.u32 %v719, 2147483648
  %v721 = vmul.f32 %v720, 1.442695
  %v722 = vpow.pop %v721
  %v723 = vadd.f32 %v722, 1.0
  %v724 = vrcp.pop %v723
  %v725 = vmul.f32 %v723, %v724
  %v726 = vsub.f32 1.0, %v725
  %v727 = vmul.f32 %v724, %v726
  %v728 = vadd.f32 %v724, %v727
  %vm729 = vweird.f32 %v723
  %vm730 = vweird.f32 %v724
  %vm731 = vmor %vm729, %vm730
  %v732 = vsel %vm731, %v724, %v728
  %v733 = vand.u32 2147483647, %v723
  %vm734 = vcmp.eq.f32.partialorder %v733, 8.507059e+37
  %v735 = vand.u32 %v723, 2147483648
  %v736 = vor.u32 1.1754944e-38, %v735
  %v737 = vsel %vm734, %v736, %v732
  %v738 = vmul.f32 1.0, %v737
  %v739 = vadd.f32 %v677, %v703
  %v740 = vxor.u32 %v739, 2147483648
  %v741 = vmul.f32 %v740, 1.442695
  %v742 = vpow.pop %v741
  %v743 = vadd.f32 %v742, 1.0
  %v744 = vrcp.pop %v743
  %v745 = vmul.f32 %v743, %v744
  %v746 = vsub.f32 1.0, %v745
  %v747 = vmul.f32 %v744, %v746
  %v748 = vadd.f32 %v744, %v747
  %vm749 = vweird.f32 %v743
  %vm750 = vweird.f32 %v744
  %vm751 = vmor %vm749, %vm750
  %v752 = vsel %vm751, %v744, %v748
  %v753 = vand.u32 2147483647, %v743
  %vm754 = vcmp.eq.f32.partialorder %v753, 8.507059e+37
  %v755 = vand.u32 %v743, 2147483648
  %v756 = vor.u32 1.1754944e-38, %v755
  %v757 = vsel %vm754, %v756, %v752
  %v758 = vmul.f32 1.0, %v757
  %v759 = vadd.f32 %v716, %v260
  %v760 = vmul.f32 %v738, %v759
  %v761 = vadd.f32 %v678, %v760
  %v762 = vtanh.pop %v761
  %v763 = vsub.f32 1.0, %v758
  %v764 = vmul.f32 %v763, %v762
  %v765 = vmul.f32 %v758, %v672
  %v766 = vadd.f32 %v764, %v765
  %s767 = smul.u32 4, 3
  %s768 = smul.addr %s767, 8
  %s769 = scalar_lea.vmem [#allocation3], %s768
  %v770 = vld [vmem:[%s769] sm:$0xff]
  %v771 = vld [vmem:[%s769 + $0x8] sm:$0xff]
  %v772 = vld [vmem:[%s769 + $0x10] sm:$0xff]
  %v773 = vpack.c.bf16 %v766, %v766
  %774 = vmatpush.bf16.msra.mxu0 %v371
  %775 = vmatpush.bf16.msra.mxu0 %v368
  %776 = vmatpush.bf16.msra.mxu0 %v365
  %777 = vmatpush.bf16.msra.mxu0 %v362
  %778 = vmatpush.bf16.msra.mxu0 %v359
  %779 = vmatpush.bf16.msra.mxu0 %v356
  %780 = vmatpush.bf16.msra.mxu0 %v353
  %781 = vmatpush.bf16.msra.mxu0 %v350
  %782 = vmatmul.bf16.gmra.mxu0 %v773
  %v783 = vpop.f32.mrf.mxu0
  %v784 = vadd.f32 0.0, %v783
  %v785 = vpop.f32.mrf.mxu0
  %786 = vdwg.mxu0
  %787 = vmatpush.bf16.msra.mxu0 %v372
  %788 = vmatpush.bf16.msra.mxu0 %v369
  %789 = vmatpush.bf16.msra.mxu0 %v366
  %790 = vmatpush.bf16.msra.mxu0 %v363
  %791 = vmatpush.bf16.msra.mxu0 %v360
  %792 = vmatpush.bf16.msra.mxu0 %v357
  %793 = vmatpush.bf16.msra.mxu0 %v354
  %794 = vmatpush.bf16.msra.mxu0 %v351
  %795 = vmatmul.bf16.gmra.mxu0 %v773
  %v796 = vpop.f32.mrf.mxu0
  %v797 = vadd.f32 0.0, %v796
  %v798 = vpop.f32.mrf.mxu0
  %799 = vdwg.mxu0
  %800 = vmatpush.bf16.msra.mxu0 %v373
  %801 = vmatpush.bf16.msra.mxu0 %v370
  %802 = vmatpush.bf16.msra.mxu0 %v367
  %803 = vmatpush.bf16.msra.mxu0 %v364
  %804 = vmatpush.bf16.msra.mxu0 %v361
  %805 = vmatpush.bf16.msra.mxu0 %v358
  %806 = vmatpush.bf16.msra.mxu0 %v355
  %807 = vmatpush.bf16.msra.mxu0 %v352
  %808 = vmatmul.bf16.gmra.mxu0 %v773
  %v809 = vpop.f32.mrf.mxu0
  %v810 = vadd.f32 0.0, %v809
  %v811 = vpop.f32.mrf.mxu0
  %812 = vdwg.mxu0
  %v813 = vadd.f32 %v770, %v784
  %v814 = vxor.u32 %v813, 2147483648
  %v815 = vmul.f32 %v814, 1.442695
  %v816 = vpow.pop %v815
  %v817 = vadd.f32 %v816, 1.0
  %v818 = vrcp.pop %v817
  %v819 = vmul.f32 %v817, %v818
  %v820 = vsub.f32 1.0, %v819
  %v821 = vmul.f32 %v818, %v820
  %v822 = vadd.f32 %v818, %v821
  %vm823 = vweird.f32 %v817
  %vm824 = vweird.f32 %v818
  %vm825 = vmor %vm823, %vm824
  %v826 = vsel %vm825, %v818, %v822
  %v827 = vand.u32 2147483647, %v817
  %vm828 = vcmp.eq.f32.partialorder %v827, 8.507059e+37
  %v829 = vand.u32 %v817, 2147483648
  %v830 = vor.u32 1.1754944e-38, %v829
  %v831 = vsel %vm828, %v830, %v826
  %v832 = vmul.f32 1.0, %v831
  %v833 = vadd.f32 %v771, %v797
  %v834 = vxor.u32 %v833, 2147483648
  %v835 = vmul.f32 %v834, 1.442695
  %v836 = vpow.pop %v835
  %v837 = vadd.f32 %v836, 1.0
  %v838 = vrcp.pop %v837
  %v839 = vmul.f32 %v837, %v838
  %v840 = vsub.f32 1.0, %v839
  %v841 = vmul.f32 %v838, %v840
  %v842 = vadd.f32 %v838, %v841
  %vm843 = vweird.f32 %v837
  %vm844 = vweird.f32 %v838
  %vm845 = vmor %vm843, %vm844
  %v846 = vsel %vm845, %v838, %v842
  %v847 = vand.u32 2147483647, %v837
  %vm848 = vcmp.eq.f32.partialorder %v847, 8.507059e+37
  %v849 = vand.u32 %v837, 2147483648
  %v850 = vor.u32 1.1754944e-38, %v849
  %v851 = vsel %vm848, %v850, %v846
  %v852 = vmul.f32 1.0, %v851
  %v853 = vadd.f32 %v810, %v260
  %v854 = vmul.f32 %v832, %v853
  %v855 = vadd.f32 %v772, %v854
  %v856 = vtanh.pop %v855
  %v857 = vsub.f32 1.0, %v852
  %v858 = vmul.f32 %v857, %v856
  %v859 = vmul.f32 %v852, %v766
  %v860 = vadd.f32 %v858, %v859
  %s861 = smul.u32 5, 3
  %s862 = smul.addr %s861, 8
  %s863 = scalar_lea.vmem [#allocation3], %s862
  %v864 = vld [vmem:[%s863] sm:$0xff]
  %v865 = vld [vmem:[%s863 + $0x8] sm:$0xff]
  %v866 = vld [vmem:[%s863 + $0x10] sm:$0xff]
  %v867 = vpack.c.bf16 %v860, %v860
  %868 = vmatpush.bf16.msra.mxu0 %v371
  %869 = vmatpush.bf16.msra.mxu0 %v368
  %870 = vmatpush.bf16.msra.mxu0 %v365
  %871 = vmatpush.bf16.msra.mxu0 %v362
  %872 = vmatpush.bf16.msra.mxu0 %v359
  %873 = vmatpush.bf16.msra.mxu0 %v356
  %874 = vmatpush.bf16.msra.mxu0 %v353
  %875 = vmatpush.bf16.msra.mxu0 %v350
  %876 = vmatmul.bf16.gmra.mxu0 %v867
  %v877 = vpop.f32.mrf.mxu0
  %v878 = vadd.f32 0.0, %v877
  %v879 = vpop.f32.mrf.mxu0
  %880 = vdwg.mxu0
  %881 = vmatpush.bf16.msra.mxu0 %v372
  %882 = vmatpush.bf16.msra.mxu0 %v369
  %883 = vmatpush.bf16.msra.mxu0 %v366
  %884 = vmatpush.bf16.msra.mxu0 %v363
  %885 = vmatpush.bf16.msra.mxu0 %v360
  %886 = vmatpush.bf16.msra.mxu0 %v357
  %887 = vmatpush.bf16.msra.mxu0 %v354
  %888 = vmatpush.bf16.msra.mxu0 %v351
  %889 = vmatmul.bf16.gmra.mxu0 %v867
  %v890 = vpop.f32.mrf.mxu0
  %v891 = vadd.f32 0.0, %v890
  %v892 = vpop.f32.mrf.mxu0
  %893 = vdwg.mxu0
  %894 = vmatpush.bf16.msra.mxu0 %v373
  %895 = vmatpush.bf16.msra.mxu0 %v370
  %896 = vmatpush.bf16.msra.mxu0 %v367
  %897 = vmatpush.bf16.msra.mxu0 %v364
  %898 = vmatpush.bf16.msra.mxu0 %v361
  %899 = vmatpush.bf16.msra.mxu0 %v358
  %900 = vmatpush.bf16.msra.mxu0 %v355
  %901 = vmatpush.bf16.msra.mxu0 %v352
  %902 = vmatmul.bf16.gmra.mxu0 %v867
  %v903 = vpop.f32.mrf.mxu0
  %v904 = vadd.f32 0.0, %v903
  %v905 = vpop.f32.mrf.mxu0
  %906 = vdwg.mxu0
  %v907 = vadd.f32 %v864, %v878
  %v908 = vxor.u32 %v907, 2147483648
  %v909 = vmul.f32 %v908, 1.442695
  %v910 = vpow.pop %v909
  %v911 = vadd.f32 %v910, 1.0
  %v912 = vrcp.pop %v911
  %v913 = vmul.f32 %v911, %v912
  %v914 = vsub.f32 1.0, %v913
  %v915 = vmul.f32 %v912, %v914
  %v916 = vadd.f32 %v912, %v915
  %vm917 = vweird.f32 %v911
  %vm918 = vweird.f32 %v912
  %vm919 = vmor %vm917, %vm918
  %v920 = vsel %vm919, %v912, %v916
  %v921 = vand.u32 2147483647, %v911
  %vm922 = vcmp.eq.f32.partialorder %v921, 8.507059e+37
  %v923 = vand.u32 %v911, 2147483648
  %v924 = vor.u32 1.1754944e-38, %v923
  %v925 = vsel %vm922, %v924, %v920
  %v926 = vmul.f32 1.0, %v925
  %v927 = vadd.f32 %v865, %v891
  %v928 = vxor.u32 %v927, 2147483648
  %v929 = vmul.f32 %v928, 1.442695
  %v930 = vpow.pop %v929
  %v931 = vadd.f32 %v930, 1.0
  %v932 = vrcp.pop %v931
  %v933 = vmul.f32 %v931, %v932
  %v934 = vsub.f32 1.0, %v933
  %v935 = vmul.f32 %v932, %v934
  %v936 = vadd.f32 %v932, %v935
  %vm937 = vweird.f32 %v931
  %vm938 = vweird.f32 %v932
  %vm939 = vmor %vm937, %vm938
  %v940 = vsel %vm939, %v932, %v936
  %v941 = vand.u32 2147483647, %v931
  %vm942 = vcmp.eq.f32.partialorder %v941, 8.507059e+37
  %v943 = vand.u32 %v931, 2147483648
  %v944 = vor.u32 1.1754944e-38, %v943
  %v945 = vsel %vm942, %v944, %v940
  %v946 = vmul.f32 1.0, %v945
  %v947 = vadd.f32 %v904, %v260
  %v948 = vmul.f32 %v926, %v947
  %v949 = vadd.f32 %v866, %v948
  %v950 = vtanh.pop %v949
  %v951 = vsub.f32 1.0, %v946
  %v952 = vmul.f32 %v951, %v950
  %v953 = vmul.f32 %v946, %v860
  %v954 = vadd.f32 %v952, %v953
  %s955 = smul.u32 6, 3
  %s956 = smul.addr %s955, 8
  %s957 = scalar_lea.vmem [#allocation3], %s956
  %v958 = vld [vmem:[%s957] sm:$0xff]
  %v959 = vld [vmem:[%s957 + $0x8] sm:$0xff]
  %v960 = vld [vmem:[%s957 + $0x10] sm:$0xff]
  %v961 = vpack.c.bf16 %v954, %v954
  %962 = vmatpush.bf16.msra.mxu0 %v371
  %963 = vmatpush.bf16.msra.mxu0 %v368
  %964 = vmatpush.bf16.msra.mxu0 %v365
  %965 = vmatpush.bf16.msra.mxu0 %v362
  %966 = vmatpush.bf16.msra.mxu0 %v359
  %967 = vmatpush.bf16.msra.mxu0 %v356
  %968 = vmatpush.bf16.msra.mxu0 %v353
  %969 = vmatpush.bf16.msra.mxu0 %v350
  %970 = vmatmul.bf16.gmra.mxu0 %v961
  %v971 = vpop.f32.mrf.mxu0
  %v972 = vadd.f32 0.0, %v971
  %v973 = vpop.f32.mrf.mxu0
  %974 = vdwg.mxu0
  %975 = vmatpush.bf16.msra.mxu0 %v372
  %976 = vmatpush.bf16.msra.mxu0 %v369
  %977 = vmatpush.bf16.msra.mxu0 %v366
  %978 = vmatpush.bf16.msra.mxu0 %v363
  %979 = vmatpush.bf16.msra.mxu0 %v360
  %980 = vmatpush.bf16.msra.mxu0 %v357
  %981 = vmatpush.bf16.msra.mxu0 %v354
  %982 = vmatpush.bf16.msra.mxu0 %v351
  %983 = vmatmul.bf16.gmra.mxu0 %v961
  %v984 = vpop.f32.mrf.mxu0
  %v985 = vadd.f32 0.0, %v984
  %v986 = vpop.f32.mrf.mxu0
  %987 = vdwg.mxu0
  %988 = vmatpush.bf16.msra.mxu0 %v373
  %989 = vmatpush.bf16.msra.mxu0 %v370
  %990 = vmatpush.bf16.msra.mxu0 %v367
  %991 = vmatpush.bf16.msra.mxu0 %v364
  %992 = vmatpush.bf16.msra.mxu0 %v361
  %993 = vmatpush.bf16.msra.mxu0 %v358
  %994 = vmatpush.bf16.msra.mxu0 %v355
  %995 = vmatpush.bf16.msra.mxu0 %v352
  %996 = vmatmul.bf16.gmra.mxu0 %v961
  %v997 = vpop.f32.mrf.mxu0
  %v998 = vadd.f32 0.0, %v997
  %v999 = vpop.f32.mrf.mxu0
  %1000 = vdwg.mxu0
  %v1001 = vadd.f32 %v958, %v972
  %v1002 = vxor.u32 %v1001, 2147483648
  %v1003 = vmul.f32 %v1002, 1.442695
  %v1004 = vpow.pop %v1003
  %v1005 = vadd.f32 %v1004, 1.0
  %v1006 = vrcp.pop %v1005
  %v1007 = vmul.f32 %v1005, %v1006
  %v1008 = vsub.f32 1.0, %v1007
  %v1009 = vmul.f32 %v1006, %v1008
  %v1010 = vadd.f32 %v1006, %v1009
  %vm1011 = vweird.f32 %v1005
  %vm1012 = vweird.f32 %v1006
  %vm1013 = vmor %vm1011, %vm1012
  %v1014 = vsel %vm1013, %v1006, %v1010
  %v1015 = vand.u32 2147483647, %v1005
  %vm1016 = vcmp.eq.f32.partialorder %v1015, 8.507059e+37
  %v1017 = vand.u32 %v1005, 2147483648
  %v1018 = vor.u32 1.1754944e-38, %v1017
  %v1019 = vsel %vm1016, %v1018, %v1014
  %v1020 = vmul.f32 1.0, %v1019
  %v1021 = vadd.f32 %v959, %v985
  %v1022 = vxor.u32 %v1021, 2147483648
  %v1023 = vmul.f32 %v1022, 1.442695
  %v1024 = vpow.pop %v1023
  %v1025 = vadd.f32 %v1024, 1.0
  %v1026 = vrcp.pop %v1025
  %v1027 = vmul.f32 %v1025, %v1026
  %v1028 = vsub.f32 1.0, %v1027
  %v1029 = vmul.f32 %v1026, %v1028
  %v1030 = vadd.f32 %v1026, %v1029
  %vm1031 = vweird.f32 %v1025
  %vm1032 = vweird.f32 %v1026
  %vm1033 = vmor %vm1031, %vm1032
  %v1034 = vsel %vm1033, %v1026, %v1030
  %v1035 = vand.u32 2147483647, %v1025
  %vm1036 = vcmp.eq.f32.partialorder %v1035, 8.507059e+37
  %v1037 = vand.u32 %v1025, 2147483648
  %v1038 = vor.u32 1.1754944e-38, %v1037
  %v1039 = vsel %vm1036, %v1038, %v1034
  %v1040 = vmul.f32 1.0, %v1039
  %v1041 = vadd.f32 %v998, %v260
  %v1042 = vmul.f32 %v1020, %v1041
  %v1043 = vadd.f32 %v960, %v1042
  %v1044 = vtanh.pop %v1043
  %v1045 = vsub.f32 1.0, %v1040
  %v1046 = vmul.f32 %v1045, %v1044
  %v1047 = vmul.f32 %v1040, %v954
  %v1048 = vadd.f32 %v1046, %v1047
  %s1049 = smul.u32 7, 3
  %s1050 = smul.addr %s1049, 8
  %s1051 = scalar_lea.vmem [#allocation3], %s1050
  %v1052 = vld [vmem:[%s1051] sm:$0xff]
  %v1053 = vld [vmem:[%s1051 + $0x8] sm:$0xff]
  %v1054 = vld [vmem:[%s1051 + $0x10] sm:$0xff]
  %v1055 = vpack.c.bf16 %v1048, %v1048
  %1056 = vmatpush.bf16.msra.mxu0 %v371
  %1057 = vmatpush.bf16.msra.mxu0 %v368
  %1058 = vmatpush.bf16.msra.mxu0 %v365
  %1059 = vmatpush.bf16.msra.mxu0 %v362
  %1060 = vmatpush.bf16.msra.mxu0 %v359
  %1061 = vmatpush.bf16.msra.mxu0 %v356
  %1062 = vmatpush.bf16.msra.mxu0 %v353
  %1063 = vmatpush.bf16.msra.mxu0 %v350
  %1064 = vmatmul.bf16.gmra.mxu0 %v1055
  %v1065 = vpop.f32.mrf.mxu0
  %v1066 = vadd.f32 0.0, %v1065
  %v1067 = vpop.f32.mrf.mxu0
  %1068 = vdwg.mxu0
  %1069 = vmatpush.bf16.msra.mxu0 %v372
  %1070 = vmatpush.bf16.msra.mxu0 %v369
  %1071 = vmatpush.bf16.msra.mxu0 %v366
  %1072 = vmatpush.bf16.msra.mxu0 %v363
  %1073 = vmatpush.bf16.msra.mxu0 %v360
  %1074 = vmatpush.bf16.msra.mxu0 %v357
  %1075 = vmatpush.bf16.msra.mxu0 %v354
  %1076 = vmatpush.bf16.msra.mxu0 %v351
  %1077 = vmatmul.bf16.gmra.mxu0 %v1055
  %v1078 = vpop.f32.mrf.mxu0
  %v1079 = vadd.f32 0.0, %v1078
  %v1080 = vpop.f32.mrf.mxu0
  %1081 = vdwg.mxu0
  %1082 = vmatpush.bf16.msra.mxu0 %v373
  %1083 = vmatpush.bf16.msra.mxu0 %v370
  %1084 = vmatpush.bf16.msra.mxu0 %v367
  %1085 = vmatpush.bf16.msra.mxu0 %v364
  %1086 = vmatpush.bf16.msra.mxu0 %v361
  %1087 = vmatpush.bf16.msra.mxu0 %v358
  %1088 = vmatpush.bf16.msra.mxu0 %v355
  %1089 = vmatpush.bf16.msra.mxu0 %v352
  %1090 = vmatmul.bf16.gmra.mxu0 %v1055
  %v1091 = vpop.f32.mrf.mxu0
  %v1092 = vadd.f32 0.0, %v1091
  %v1093 = vpop.f32.mrf.mxu0
  %1094 = vdwg.mxu0
  %v1095 = vadd.f32 %v1052, %v1066
  %v1096 = vxor.u32 %v1095, 2147483648
  %v1097 = vmul.f32 %v1096, 1.442695
  %v1098 = vpow.pop %v1097
  %v1099 = vadd.f32 %v1098, 1.0
  %v1100 = vrcp.pop %v1099
  %v1101 = vmul.f32 %v1099, %v1100
  %v1102 = vsub.f32 1.0, %v1101
  %v1103 = vmul.f32 %v1100, %v1102
  %v1104 = vadd.f32 %v1100, %v1103
  %vm1105 = vweird.f32 %v1099
  %vm1106 = vweird.f32 %v1100
  %vm1107 = vmor %vm1105, %vm1106
  %v1108 = vsel %vm1107, %v1100, %v1104
  %v1109 = vand.u32 2147483647, %v1099
  %vm1110 = vcmp.eq.f32.partialorder %v1109, 8.507059e+37
  %v1111 = vand.u32 %v1099, 2147483648
  %v1112 = vor.u32 1.1754944e-38, %v1111
  %v1113 = vsel %vm1110, %v1112, %v1108
  %v1114 = vmul.f32 1.0, %v1113
  %v1115 = vadd.f32 %v1053, %v1079
  %v1116 = vxor.u32 %v1115, 2147483648
  %v1117 = vmul.f32 %v1116, 1.442695
  %v1118 = vpow.pop %v1117
  %v1119 = vadd.f32 %v1118, 1.0
  %v1120 = vrcp.pop %v1119
  %v1121 = vmul.f32 %v1119, %v1120
  %v1122 = vsub.f32 1.0, %v1121
  %v1123 = vmul.f32 %v1120, %v1122
  %v1124 = vadd.f32 %v1120, %v1123
  %vm1125 = vweird.f32 %v1119
  %vm1126 = vweird.f32 %v1120
  %vm1127 = vmor %vm1125, %vm1126
  %v1128 = vsel %vm1127, %v1120, %v1124
  %v1129 = vand.u32 2147483647, %v1119
  %vm1130 = vcmp.eq.f32.partialorder %v1129, 8.507059e+37
  %v1131 = vand.u32 %v1119, 2147483648
  %v1132 = vor.u32 1.1754944e-38, %v1131
  %v1133 = vsel %vm1130, %v1132, %v1128
  %v1134 = vmul.f32 1.0, %v1133
  %v1135 = vadd.f32 %v1092, %v260
  %v1136 = vmul.f32 %v1114, %v1135
  %v1137 = vadd.f32 %v1054, %v1136
  %v1138 = vtanh.pop %v1137
  %v1139 = vsub.f32 1.0, %v1134
  %v1140 = vmul.f32 %v1139, %v1138
  %v1141 = vmul.f32 %v1134, %v1048
  %v1142 = vadd.f32 %v1140, %v1141
  %1143 = vst [vmem:[#allocation2] sm:$0xff] %v1142
  // Predicated region
  $region26: #{rnn_encoder_forward.1} parent=0 // pred_check
    %p1144 = pneg %p21
  $region27: #{rnn_encoder_forward.1} parent=0 // pred_check_branch
    %1146 = sbr.rel (%p1144) target = $region29
  $region28: #{rnn_encoder_forward.1} parent=0 // pred_region
    %1147 = vst [vmem:[%s5] sm:$0xff] %v1142
  $region29: #{rnn_encoder_forward.1} parent=0 // pred_fallthru
    _
  // Predicated region
  $region30: #{rnn_encoder_forward.1} parent=0 // pred_check
    _
  $region31: #{rnn_encoder_forward.1} parent=0 // pred_check_branch
    %1149 = sbr.rel (0) target = $region33
  $region32: #{rnn_encoder_forward.1} parent=0 // pred_region
    _
  $region33: #{rnn_encoder_forward.1} parent=0 // pred_fallthru
    _
  // Predicated region
  $region34: #{rnn_encoder_forward.1} parent=0 // pred_check
    _
  $region35: #{rnn_encoder_forward.1} parent=0 // pred_check_branch
    %1151 = sbr.rel (0) target = $region37
  $region36: #{rnn_encoder_forward.1} parent=0 // pred_region
    _
  $region37: #{rnn_encoder_forward.1} parent=0 // pred_fallthru
    _

</llo_original>
